<compile_context>
chip_gen: v5e
topology: v5e:2x2
jax: 0.10.0
libtpu: 0.0.40
codegen_flags: <defaults>
</compile_context>

<pallas_src>
import functools

import jax
import jax.numpy as jnp
from jax.experimental import pallas as pl
from jax.experimental.pallas import tpu as pltpu

VMEM_SPEC = pl.BlockSpec(memory_space=pltpu.MemorySpace.VMEM)

# Set False if closer parity with PyTorch's exact divides is required
# (approx=True keeps divides on the otherwise-idle EUP slot; ~1e-3 rel. error).
_APPROX_RECIP = True

_SUBLANE = 8
_LANE = 128


def _round_up(v, m):
    return -(-v // m) * m


def _param_layout(nfeat, nhid, nclass, nheads, gat_hid):
    """Row layout of the single packed (rows, 128) parameter buffer.

    Every logical parameter starts on a sublane-aligned row (multiple of 8) and at
    lane 0, so the in-kernel static slices stay tile-aligned (no materialized copies).
    """
    layout = {}
    row = 0

    def add(name, nrows, ncols):
        nonlocal row
        assert ncols <= _LANE, (name, ncols)
        layout[name] = (row, nrows, ncols)
        row += _round_up(nrows, _SUBLANE)

    # [gc1_w | gat1_W(all heads) | gat1_W @ a1_blockdiag]   (layer-1 fused projection)
    add("w1", nfeat, nhid + nheads * gat_hid + 2 * nheads)
    add("gc2_w", nhid, nhid)
    # [gat2_w | gat2_w @ gat2_a]                            (layer-2 GAT fused projection)
    add("w2", nheads * gat_hid, nhid + 2)
    # [w_gcn ; mix_alpha * w_gat]                           (fused output combine)
    add("w_out", 2 * nhid, nclass)
    # single row: [gc1_b | gc2_b]
    add("bias", 1, 2 * nhid)
    return layout, row


def _eye(n, dtype=jnp.float32):
    row = jax.lax.broadcasted_iota(jnp.int32, (n, n), 0)
    col = jax.lax.broadcasted_iota(jnp.int32, (n, n), 1)
    return (row == col).astype(dtype)


def _masked_softmax_agg(dst_col, src_row, add_mask, h, *, alpha):
    """hp_i = sum_j e_ij h_j / sum_j e_ij with e_ij = exp(-leakyrelu(dst_i + src_j))
    restricted to edges (add_mask = 0 on edges, -inf off edges)."""
    f32, bf16 = jnp.float32, jnp.bfloat16
    logits = dst_col + src_row                                # (N, N)
    lrelu = jnp.where(logits > 0, logits, alpha * logits)     # leaky_relu
    neg = add_mask - lrelu                                    # off-edge -> -inf
    row_max = jnp.max(neg, axis=1, keepdims=True)             # finite (self-loop)
    e = jnp.exp(neg - row_max)                                # exp(-inf) = 0, no 2nd where
    inv_den = pl.reciprocal(jnp.sum(e, axis=1, keepdims=True), approx=_APPROX_RECIP)
    agg = jnp.dot(e.astype(bf16), h.astype(bf16), preferred_element_type=f32)
    return agg * inv_den


def _tail_gnn_kernel(x_ref, adj_ref, p_ref, out_ref, *,
                     layout, nheads, gat_hid, nfeat, nhid, nclass, lrelu_alpha):
    f32, bf16 = jnp.float32, jnp.bfloat16
    n = adj_ref.shape[0]

    def param(name):
        r0, nr, nc = layout[name]
        return p_ref[r0:r0 + nr, 0:nc]

    x = x_ref[...]
    x_b = x.astype(bf16)

    # ---- adjacency preprocessing: computed ONCE, reused by every branch ------------
    adj_i = adj_ref[...] + _eye(n)                            # adj + I
    adj_b = adj_i.astype(bf16)                                # {0,1}: exact in bf16
    inv_deg = pl.reciprocal(jnp.sum(adj_i, axis=1, keepdims=True),
                            approx=_APPROX_RECIP)             # deg >= 1: no clamp needed
    add_mask = jnp.where(adj_i != 0.0, 0.0, -jnp.inf)         # shared additive edge mask

    bias = param("bias")
    gc1_b = bias[:, 0:nhid]
    gc2_b = bias[:, nhid:2 * nhid]

    # ---- layer-1 fused projection (one MXU push): GCN-1 + all GAT-1 heads + scores --
    y1 = jnp.dot(x_b, param("w1").astype(bf16), preferred_element_type=f32)
    x1g_pre = y1[:, 0:nhid]                                   # GCN-1 pre-aggregation
    h_all = y1[:, nhid:nhid + nheads * gat_hid]               # all GAT-1 head projections
    ss = y1[:, nhid + nheads * gat_hid:]                      # [dst scores | src scores]

    # ---- GCN relation branch (normalize AFTER the aggregation matmul) ---------------
    x1_gcn = (jnp.dot(adj_b, x1g_pre.astype(bf16), preferred_element_type=f32)
              * inv_deg + gc1_b)
    x2_gcn = (jnp.dot(adj_b,
                      jnp.dot(x1_gcn.astype(bf16), param("gc2_w").astype(bf16),
                              preferred_element_type=f32).astype(bf16),
                      preferred_element_type=f32) * inv_deg + gc2_b)

    # ---- GAT relation branch, layer 1: nheads concat heads --------------------------
    # ONE transpose of all heads' source-score columns instead of one per head.
    src_t = ss[:, nheads:2 * nheads].T                        # (nheads, N)
    hp_parts = []
    for hd in range(nheads):                                  # static nheads-iter loop
        hp = _masked_softmax_agg(
            ss[:, hd:hd + 1], src_t[hd:hd + 1, :], add_mask,
            h_all[:, hd * gat_hid:(hd + 1) * gat_hid], alpha=lrelu_alpha)
        hp_parts.append(jnp.where(hp > 0, hp, jnp.exp(hp) - 1.0))   # F.elu (concat=True)
    # Heads stacked on the lane axis -> ONE layer-2 projection matmul.
    hp_stack = jnp.concatenate(hp_parts, axis=1)              # (N, nheads*gat_hid)

    # ---- GAT layer 2: single averaging head; its scores folded into the projection --
    y2 = jnp.dot(hp_stack.astype(bf16), param("w2").astype(bf16),
                 preferred_element_type=f32)
    h2 = y2[:, 0:nhid]
    ss2 = y2[:, nhid:nhid + 2]
    x2_gat = _masked_softmax_agg(ss2[:, 0:1], ss2[:, 1:2].T, add_mask, h2,
                                 alpha=lrelu_alpha)           # concat=False -> no ELU

    # ---- fused output combine: tanh([x2_gcn | x2_gat] @ [w_gcn ; alpha*w_gat]) ------
    xcat = jnp.concatenate([x2_gcn, x2_gat], axis=1)          # (N, 2*nhid), one lane tile
    x2 = jnp.tanh(jnp.dot(xcat.astype(bf16), param("w_out").astype(bf16),
                          preferred_element_type=f32))

    out_ref[:, 0:nfeat] = x
    out_ref[:, nfeat:nfeat + nclass] = x2


# ------------------------------ full forward ---------------------------------
def tail_gnn_forward(x, adj, packed_params, *, nfeat, nhid, nclass, nheads, gat_hid):
    n = x.shape[0]
    layout, rows = _param_layout(nfeat, nhid, nclass, nheads, gat_hid)
    assert packed_params.shape == (rows, _LANE), packed_params.shape
    kernel = functools.partial(
        _tail_gnn_kernel, layout=layout, nheads=nheads, gat_hid=gat_hid,
        nfeat=nfeat, nhid=nhid, nclass=nclass, lrelu_alpha=0.2)
    # TODO(synk): for batches of independent graphs add a leading "parallel" grid
    # axis (uses both v7x TensorCores); a single 64-node graph needs no grid.
    return pl.pallas_call(
        kernel,
        out_shape=jax.ShapeDtypeStruct((n, nfeat + nclass), jnp.float32),
        in_specs=[VMEM_SPEC] * 3,
        out_specs=VMEM_SPEC,
    )(x, adj, packed_params)


# --------------------------- parameter construction ---------------------------
def init_params(key, nfeat, nhid, nclass, gat_hid=8, nheads=3):
    """Raw, PyTorch-shaped parameters (before host-side packing/fusion)."""
    ks = jax.random.split(key, 10)

    def uniform(k, shape, bound):
        return jax.random.uniform(k, shape, jnp.float32, -bound, bound)

    def l2norm_rows(m):
        return m / jnp.maximum(jnp.linalg.norm(m, axis=1, keepdims=True), 1e-12)

    return {
        # GraphConv weights: uniform(-1/sqrt(out), 1/sqrt(out)).
        "gc1_w": uniform(ks[0], (nfeat, nhid), 1.0 / jnp.sqrt(nhid)),
        "gc1_b": uniform(ks[1], (1, nhid), 1.0 / jnp.sqrt(nhid)),
        "gc2_w": uniform(ks[2], (nhid, nhid), 1.0 / jnp.sqrt(nhid)),
        "gc2_b": uniform(ks[3], (1, nhid), 1.0 / jnp.sqrt(nhid)),
        # GAT layer 1: heads stacked on the lane axis of W (head h = cols
        # [h*gat_hid:(h+1)*gat_hid]); a_t head h = cols [2h (dst), 2h+1 (src)].
        "gat1_w": jax.random.normal(ks[4], (nfeat, nheads * gat_hid), jnp.float32) * 0.1,
        "gat1_a_t": jax.random.normal(ks[5], (gat_hid, 2 * nheads), jnp.float32) * 0.1,
        # GAT layer 2: single averaging head.
        "gat2_w": jax.random.normal(ks[6], (nheads * gat_hid, nhid), jnp.float32) * 0.1,
        "gat2_a_t": jax.random.normal(ks[7], (nhid, 2), jnp.float32) * 0.1,
        # Output projections: randn with L2-normalized rows (init_randn_uni).
        "w_gcn": l2norm_rows(jax.random.normal(ks[8], (nhid, nclass), jnp.float32)),
        "w_gat": l2norm_rows(jax.random.normal(ks[9], (nhid, nclass), jnp.float32)),
    }


def pack_params(raw, *, nfeat, nhid, nclass, nheads, gat_hid, mix_alpha=0.1):
    """Host-side: fold/concat the matmul weights and pack everything into one
    (rows, 128) f32 buffer -> a single HBM->VMEM DMA instead of 10."""
    layout, rows = _param_layout(nfeat, nhid, nclass, nheads, gat_hid)
    f32 = jnp.float32

    # Block-diagonal layer-1 attention vectors: col h = dst vec of head h,
    # col nheads+h = src vec of head h (rows h*gat_hid:(h+1)*gat_hid).
    a1_bd = jnp.zeros((nheads * gat_hid, 2 * nheads), f32)
    for h in range(nheads):
        blk = slice(h * gat_hid, (h + 1) * gat_hid)
        a1_bd = a1_bd.at[blk, h].set(raw["gat1_a_t"][:, 2 * h])
        a1_bd = a1_bd.at[blk, nheads + h].set(raw["gat1_a_t"][:, 2 * h + 1])

    w1 = jnp.concatenate(
        [raw["gc1_w"], raw["gat1_w"], raw["gat1_w"] @ a1_bd], axis=1)
    w2 = jnp.concatenate([raw["gat2_w"], raw["gat2_w"] @ raw["gat2_a_t"]], axis=1)
    w_out = jnp.concatenate([raw["w_gcn"], mix_alpha * raw["w_gat"]], axis=0)
    bias = jnp.concatenate([raw["gc1_b"], raw["gc2_b"]], axis=1)

    buf = jnp.zeros((rows, _LANE), f32)
    for name, mat in (("w1", w1), ("gc2_w", raw["gc2_w"]), ("w2", w2),
                      ("w_out", w_out), ("bias", bias)):
        r0, nr, nc = layout[name]
        assert mat.shape == (nr, nc), (name, mat.shape, (nr, nc))
        buf = buf.at[r0:r0 + nr, 0:nc].set(mat.astype(f32))
    return buf


if __name__ == "__main__":
    N, NFEAT, NHID, NCLASS = 64, 32, 32, 16
    GAT_HID, NHEADS = 8, 3

    key = jax.random.PRNGKey(0)
    k_x, k_adj, k_p = jax.random.split(key, 3)

    x = jax.random.normal(k_x, (N, NFEAT), jnp.float32)
    # Random binary symmetric adjacency (no self loops; the kernel adds them).
    a = (jax.random.uniform(k_adj, (N, N)) < 0.1).astype(jnp.float32)
    adj = jnp.clip(a + a.T, 0.0, 1.0) * (1.0 - jnp.eye(N, dtype=jnp.float32))

    raw = init_params(k_p, NFEAT, NHID, NCLASS, gat_hid=GAT_HID, nheads=NHEADS)
    packed = pack_params(raw, nfeat=NFEAT, nhid=NHID, nclass=NCLASS,
                         nheads=NHEADS, gat_hid=GAT_HID, mix_alpha=0.1)

    out = jax.block_until_ready(
        tail_gnn_forward(x, adj, packed, nfeat=NFEAT, nhid=NHID, nclass=NCLASS,
                         nheads=NHEADS, gat_hid=GAT_HID))
    assert out.shape == (N, NFEAT + NCLASS), out.shape
    assert bool(jnp.all(jnp.isfinite(out)))
    print("KERNEL_OK")
</pallas_src>

<mosaic_0001>
module attributes {stable_mosaic.version = 11 : i64} {
  func.func @_tail_gnn_kernel(%arg0: memref<64x32xf32, #tpu.memory_space<vmem>>, %arg1: memref<64x64xf32, #tpu.memory_space<vmem>>, %arg2: memref<160x128xf32, #tpu.memory_space<vmem>>, %arg3: memref<64x48xf32, #tpu.memory_space<vmem>>) attributes {dimension_semantics = [], scalar_prefetch = 0 : i64, scratch_operands = 0 : i64, tpu.core_type = #tpu.core_type<tc>} {
    %c0 = arith.constant 0 : index
    %c0_0 = arith.constant 0 : index
    %0 = vector.load %arg0[%c0, %c0_0] : memref<64x32xf32, #tpu.memory_space<vmem>>, vector<64x32xf32>
    %1 = arith.truncf %0 : vector<64x32xf32> to vector<64x32xbf16>
    %c0_1 = arith.constant 0 : index
    %c0_2 = arith.constant 0 : index
    %2 = vector.load %arg1[%c0_1, %c0_2] : memref<64x64xf32, #tpu.memory_space<vmem>>, vector<64x64xf32>
    %3 = tpu.iota {dimensions = array<i32: 0>} : vector<64x64xi32>
    %4 = tpu.iota {dimensions = array<i32: 1>} : vector<64x64xi32>
    %5 = arith.cmpi eq, %3, %4 : vector<64x64xi32>
    %6 = arith.extui %5 : vector<64x64xi1> to vector<64x64xi32>
    %7 = arith.sitofp %6 : vector<64x64xi32> to vector<64x64xf32>
    %8 = arith.addf %2, %7 : vector<64x64xf32>
    %9 = arith.truncf %8 : vector<64x64xf32> to vector<64x64xbf16>
    %cst = arith.constant dense<0.000000e+00> : vector<64xf32>
    %10 = vector.multi_reduction <add>, %8, %cst [1] : vector<64x64xf32> to vector<64xf32>
    %11 = vector.shape_cast %10 : vector<64xf32> to vector<64x1xf32>
    %12 = tpu.reciprocal %11 {approx = true} : vector<64x1xf32> -> vector<64x1xf32>
    %cst_3 = arith.constant 0.000000e+00 : f32
    %13 = vector.broadcast %cst_3 : f32 to vector<64x64xf32>
    %14 = arith.cmpf one, %8, %13 : vector<64x64xf32>
    %cst_4 = arith.constant 0.000000e+00 : f32
    %cst_5 = arith.constant 0xFF800000 : f32
    %15 = vector.broadcast %cst_4 : f32 to vector<64x64xf32>
    %16 = vector.broadcast %cst_5 : f32 to vector<64x64xf32>
    %17 = arith.select %14, %15, %16 : vector<64x64xi1>, vector<64x64xf32>
    %c152 = arith.constant 152 : index
    %c0_6 = arith.constant 0 : index
    %18 = vector.load %arg2[%c152, %c0_6] : memref<160x128xf32, #tpu.memory_space<vmem>>, vector<1x64xf32>
    %19 = vector.extract_strided_slice %18 {offsets = [0, 0], sizes = [1, 32], strides = [1, 1]} : vector<1x64xf32> to vector<1x32xf32>
    %20 = vector.extract_strided_slice %18 {offsets = [0, 32], sizes = [1, 32], strides = [1, 1]} : vector<1x64xf32> to vector<1x32xf32>
    %c0_7 = arith.constant 0 : index
    %c0_8 = arith.constant 0 : index
    %21 = vector.load %arg2[%c0_7, %c0_8] : memref<160x128xf32, #tpu.memory_space<vmem>>, vector<32x62xf32>
    %22 = arith.truncf %21 : vector<32x62xf32> to vector<32x62xbf16>
    %cst_9 = arith.constant dense<0.000000e+00> : vector<64x62xf32>
    %23 = tpu.matmul %1, %22, %cst_9 {dimension_numbers = #tpu.dot_dimension_numbers<[1], [0], [0], [1], [0, 0, 1, 1], [], []>} : vector<64x32xbf16>, vector<32x62xbf16>, vector<64x62xf32> -> vector<64x62xf32>
    %24 = vector.extract_strided_slice %23 {offsets = [0, 0], sizes = [64, 32], strides = [1, 1]} : vector<64x62xf32> to vector<64x32xf32>
    %25 = vector.extract_strided_slice %23 {offsets = [0, 32], sizes = [64, 24], strides = [1, 1]} : vector<64x62xf32> to vector<64x24xf32>
    %26 = vector.extract_strided_slice %23 {offsets = [0, 56], sizes = [64, 6], strides = [1, 1]} : vector<64x62xf32> to vector<64x6xf32>
    %27 = arith.truncf %24 : vector<64x32xf32> to vector<64x32xbf16>
    %cst_10 = arith.constant dense<0.000000e+00> : vector<64x32xf32>
    %28 = tpu.matmul %9, %27, %cst_10 {dimension_numbers = #tpu.dot_dimension_numbers<[1], [0], [0], [1], [0, 0, 1, 1], [], []>} : vector<64x64xbf16>, vector<64x32xbf16>, vector<64x32xf32> -> vector<64x32xf32>
    %29 = vector.broadcast %12 : vector<64x1xf32> to vector<64x32xf32>
    %30 = arith.mulf %28, %29 : vector<64x32xf32>
    %31 = vector.broadcast %19 : vector<1x32xf32> to vector<64x32xf32>
    %32 = arith.addf %30, %31 : vector<64x32xf32>
    %33 = arith.truncf %32 : vector<64x32xf32> to vector<64x32xbf16>
    %c32 = arith.constant 32 : index
    %c0_11 = arith.constant 0 : index
    %34 = vector.load %arg2[%c32, %c0_11] : memref<160x128xf32, #tpu.memory_space<vmem>>, vector<32x32xf32>
    %35 = arith.truncf %34 : vector<32x32xf32> to vector<32x32xbf16>
    %cst_12 = arith.constant dense<0.000000e+00> : vector<64x32xf32>
    %36 = tpu.matmul %33, %35, %cst_12 {dimension_numbers = #tpu.dot_dimension_numbers<[1], [0], [0], [1], [0, 0, 1, 1], [], []>} : vector<64x32xbf16>, vector<32x32xbf16>, vector<64x32xf32> -> vector<64x32xf32>
    %37 = arith.truncf %36 : vector<64x32xf32> to vector<64x32xbf16>
    %cst_13 = arith.constant dense<0.000000e+00> : vector<64x32xf32>
    %38 = tpu.matmul %9, %37, %cst_13 {dimension_numbers = #tpu.dot_dimension_numbers<[1], [0], [0], [1], [0, 0, 1, 1], [], []>} : vector<64x64xbf16>, vector<64x32xbf16>, vector<64x32xf32> -> vector<64x32xf32>
    %39 = vector.broadcast %12 : vector<64x1xf32> to vector<64x32xf32>
    %40 = arith.mulf %38, %39 : vector<64x32xf32>
    %41 = vector.broadcast %20 : vector<1x32xf32> to vector<64x32xf32>
    %42 = arith.addf %40, %41 : vector<64x32xf32>
    %43 = vector.extract_strided_slice %26 {offsets = [0, 3], sizes = [64, 3], strides = [1, 1]} : vector<64x6xf32> to vector<64x3xf32>
    %44 = tpu.transpose %43, [1, 0] : vector<64x3xf32> -> vector<3x64xf32>
    %45 = vector.extract_strided_slice %26 {offsets = [0, 0], sizes = [64, 1], strides = [1, 1]} : vector<64x6xf32> to vector<64x1xf32>
    %46 = vector.extract_strided_slice %44 {offsets = [0, 0], sizes = [1, 64], strides = [1, 1]} : vector<3x64xf32> to vector<1x64xf32>
    %47 = vector.extract_strided_slice %25 {offsets = [0, 0], sizes = [64, 8], strides = [1, 1]} : vector<64x24xf32> to vector<64x8xf32>
    %48 = vector.broadcast %45 : vector<64x1xf32> to vector<64x64xf32>
    %49 = vector.broadcast %46 : vector<1x64xf32> to vector<64x64xf32>
    %50 = arith.addf %48, %49 : vector<64x64xf32>
    %cst_14 = arith.constant 0.000000e+00 : f32
    %51 = vector.broadcast %cst_14 : f32 to vector<64x64xf32>
    %52 = arith.cmpf ogt, %50, %51 : vector<64x64xf32>
    %cst_15 = arith.constant 2.000000e-01 : f32
    %53 = vector.broadcast %cst_15 : f32 to vector<64x64xf32>
    %54 = arith.mulf %53, %50 : vector<64x64xf32>
    %55 = arith.select %52, %50, %54 : vector<64x64xi1>, vector<64x64xf32>
    %56 = arith.subf %17, %55 : vector<64x64xf32>
    %cst_16 = arith.constant dense<0xFF800000> : vector<64xf32>
    %57 = vector.multi_reduction <maximumf>, %56, %cst_16 [1] : vector<64x64xf32> to vector<64xf32>
    %58 = vector.shape_cast %57 : vector<64xf32> to vector<64x1xf32>
    %59 = vector.broadcast %58 : vector<64x1xf32> to vector<64x64xf32>
    %60 = arith.subf %56, %59 : vector<64x64xf32>
    %61 = math.exp %60 : vector<64x64xf32>
    %cst_17 = arith.constant dense<0.000000e+00> : vector<64xf32>
    %62 = vector.multi_reduction <add>, %61, %cst_17 [1] : vector<64x64xf32> to vector<64xf32>
    %63 = vector.shape_cast %62 : vector<64xf32> to vector<64x1xf32>
    %64 = tpu.reciprocal %63 {approx = true} : vector<64x1xf32> -> vector<64x1xf32>
    %65 = arith.truncf %61 : vector<64x64xf32> to vector<64x64xbf16>
    %66 = arith.truncf %47 : vector<64x8xf32> to vector<64x8xbf16>
    %cst_18 = arith.constant dense<0.000000e+00> : vector<64x8xf32>
    %67 = tpu.matmul %65, %66, %cst_18 {dimension_numbers = #tpu.dot_dimension_numbers<[1], [0], [0], [1], [0, 0, 1, 1], [], []>} : vector<64x64xbf16>, vector<64x8xbf16>, vector<64x8xf32> -> vector<64x8xf32>
    %68 = vector.broadcast %64 : vector<64x1xf32> to vector<64x8xf32>
    %69 = arith.mulf %67, %68 : vector<64x8xf32>
    %cst_19 = arith.constant 0.000000e+00 : f32
    %70 = vector.broadcast %cst_19 : f32 to vector<64x8xf32>
    %71 = arith.cmpf ogt, %69, %70 : vector<64x8xf32>
    %72 = math.exp %69 : vector<64x8xf32>
    %cst_20 = arith.constant 1.000000e+00 : f32
    %73 = vector.broadcast %cst_20 : f32 to vector<64x8xf32>
    %74 = arith.subf %72, %73 : vector<64x8xf32>
    %75 = arith.select %71, %69, %74 : vector<64x8xi1>, vector<64x8xf32>
    %76 = vector.extract_strided_slice %26 {offsets = [0, 1], sizes = [64, 1], strides = [1, 1]} : vector<64x6xf32> to vector<64x1xf32>
    %77 = vector.extract_strided_slice %44 {offsets = [1, 0], sizes = [1, 64], strides = [1, 1]} : vector<3x64xf32> to vector<1x64xf32>
    %78 = vector.extract_strided_slice %25 {offsets = [0, 8], sizes = [64, 8], strides = [1, 1]} : vector<64x24xf32> to vector<64x8xf32>
    %79 = vector.broadcast %76 : vector<64x1xf32> to vector<64x64xf32>
    %80 = vector.broadcast %77 : vector<1x64xf32> to vector<64x64xf32>
    %81 = arith.addf %79, %80 : vector<64x64xf32>
    %cst_21 = arith.constant 0.000000e+00 : f32
    %82 = vector.broadcast %cst_21 : f32 to vector<64x64xf32>
    %83 = arith.cmpf ogt, %81, %82 : vector<64x64xf32>
    %cst_22 = arith.constant 2.000000e-01 : f32
    %84 = vector.broadcast %cst_22 : f32 to vector<64x64xf32>
    %85 = arith.mulf %84, %81 : vector<64x64xf32>
    %86 = arith.select %83, %81, %85 : vector<64x64xi1>, vector<64x64xf32>
    %87 = arith.subf %17, %86 : vector<64x64xf32>
    %cst_23 = arith.constant dense<0xFF800000> : vector<64xf32>
    %88 = vector.multi_reduction <maximumf>, %87, %cst_23 [1] : vector<64x64xf32> to vector<64xf32>
    %89 = vector.shape_cast %88 : vector<64xf32> to vector<64x1xf32>
    %90 = vector.broadcast %89 : vector<64x1xf32> to vector<64x64xf32>
    %91 = arith.subf %87, %90 : vector<64x64xf32>
    %92 = math.exp %91 : vector<64x64xf32>
    %cst_24 = arith.constant dense<0.000000e+00> : vector<64xf32>
    %93 = vector.multi_reduction <add>, %92, %cst_24 [1] : vector<64x64xf32> to vector<64xf32>
    %94 = vector.shape_cast %93 : vector<64xf32> to vector<64x1xf32>
    %95 = tpu.reciprocal %94 {approx = true} : vector<64x1xf32> -> vector<64x1xf32>
    %96 = arith.truncf %92 : vector<64x64xf32> to vector<64x64xbf16>
    %97 = arith.truncf %78 : vector<64x8xf32> to vector<64x8xbf16>
    %cst_25 = arith.constant dense<0.000000e+00> : vector<64x8xf32>
    %98 = tpu.matmul %96, %97, %cst_25 {dimension_numbers = #tpu.dot_dimension_numbers<[1], [0], [0], [1], [0, 0, 1, 1], [], []>} : vector<64x64xbf16>, vector<64x8xbf16>, vector<64x8xf32> -> vector<64x8xf32>
    %99 = vector.broadcast %95 : vector<64x1xf32> to vector<64x8xf32>
    %100 = arith.mulf %98, %99 : vector<64x8xf32>
    %cst_26 = arith.constant 0.000000e+00 : f32
    %101 = vector.broadcast %cst_26 : f32 to vector<64x8xf32>
    %102 = arith.cmpf ogt, %100, %101 : vector<64x8xf32>
    %103 = math.exp %100 : vector<64x8xf32>
    %cst_27 = arith.constant 1.000000e+00 : f32
    %104 = vector.broadcast %cst_27 : f32 to vector<64x8xf32>
    %105 = arith.subf %103, %104 : vector<64x8xf32>
    %106 = arith.select %102, %100, %105 : vector<64x8xi1>, vector<64x8xf32>
    %107 = vector.extract_strided_slice %26 {offsets = [0, 2], sizes = [64, 1], strides = [1, 1]} : vector<64x6xf32> to vector<64x1xf32>
    %108 = vector.extract_strided_slice %44 {offsets = [2, 0], sizes = [1, 64], strides = [1, 1]} : vector<3x64xf32> to vector<1x64xf32>
    %109 = vector.extract_strided_slice %25 {offsets = [0, 16], sizes = [64, 8], strides = [1, 1]} : vector<64x24xf32> to vector<64x8xf32>
    %110 = vector.broadcast %107 : vector<64x1xf32> to vector<64x64xf32>
    %111 = vector.broadcast %108 : vector<1x64xf32> to vector<64x64xf32>
    %112 = arith.addf %110, %111 : vector<64x64xf32>
    %cst_28 = arith.constant 0.000000e+00 : f32
    %113 = vector.broadcast %cst_28 : f32 to vector<64x64xf32>
    %114 = arith.cmpf ogt, %112, %113 : vector<64x64xf32>
    %cst_29 = arith.constant 2.000000e-01 : f32
    %115 = vector.broadcast %cst_29 : f32 to vector<64x64xf32>
    %116 = arith.mulf %115, %112 : vector<64x64xf32>
    %117 = arith.select %114, %112, %116 : vector<64x64xi1>, vector<64x64xf32>
    %118 = arith.subf %17, %117 : vector<64x64xf32>
    %cst_30 = arith.constant dense<0xFF800000> : vector<64xf32>
    %119 = vector.multi_reduction <maximumf>, %118, %cst_30 [1] : vector<64x64xf32> to vector<64xf32>
    %120 = vector.shape_cast %119 : vector<64xf32> to vector<64x1xf32>
    %121 = vector.broadcast %120 : vector<64x1xf32> to vector<64x64xf32>
    %122 = arith.subf %118, %121 : vector<64x64xf32>
    %123 = math.exp %122 : vector<64x64xf32>
    %cst_31 = arith.constant dense<0.000000e+00> : vector<64xf32>
    %124 = vector.multi_reduction <add>, %123, %cst_31 [1] : vector<64x64xf32> to vector<64xf32>
    %125 = vector.shape_cast %124 : vector<64xf32> to vector<64x1xf32>
    %126 = tpu.reciprocal %125 {approx = true} : vector<64x1xf32> -> vector<64x1xf32>
    %127 = arith.truncf %123 : vector<64x64xf32> to vector<64x64xbf16>
    %128 = arith.truncf %109 : vector<64x8xf32> to vector<64x8xbf16>
    %cst_32 = arith.constant dense<0.000000e+00> : vector<64x8xf32>
    %129 = tpu.matmul %127, %128, %cst_32 {dimension_numbers = #tpu.dot_dimension_numbers<[1], [0], [0], [1], [0, 0, 1, 1], [], []>} : vector<64x64xbf16>, vector<64x8xbf16>, vector<64x8xf32> -> vector<64x8xf32>
    %130 = vector.broadcast %126 : vector<64x1xf32> to vector<64x8xf32>
    %131 = arith.mulf %129, %130 : vector<64x8xf32>
    %cst_33 = arith.constant 0.000000e+00 : f32
    %132 = vector.broadcast %cst_33 : f32 to vector<64x8xf32>
    %133 = arith.cmpf ogt, %131, %132 : vector<64x8xf32>
    %134 = math.exp %131 : vector<64x8xf32>
    %cst_34 = arith.constant 1.000000e+00 : f32
    %135 = vector.broadcast %cst_34 : f32 to vector<64x8xf32>
    %136 = arith.subf %134, %135 : vector<64x8xf32>
    %137 = arith.select %133, %131, %136 : vector<64x8xi1>, vector<64x8xf32>
    %138 = tpu.concatenate %75, %106, %137 in 1 : vector<64x8xf32>, vector<64x8xf32>, vector<64x8xf32> -> vector<64x24xf32>
    %139 = arith.truncf %138 : vector<64x24xf32> to vector<64x24xbf16>
    %c64 = arith.constant 64 : index
    %c0_35 = arith.constant 0 : index
    %140 = vector.load %arg2[%c64, %c0_35] : memref<160x128xf32, #tpu.memory_space<vmem>>, vector<24x34xf32>
    %141 = arith.truncf %140 : vector<24x34xf32> to vector<24x34xbf16>
    %cst_36 = arith.constant dense<0.000000e+00> : vector<64x34xf32>
    %142 = tpu.matmul %139, %141, %cst_36 {dimension_numbers = #tpu.dot_dimension_numbers<[1], [0], [0], [1], [0, 0, 1, 1], [], []>} : vector<64x24xbf16>, vector<24x34xbf16>, vector<64x34xf32> -> vector<64x34xf32>
    %143 = vector.extract_strided_slice %142 {offsets = [0, 0], sizes = [64, 32], strides = [1, 1]} : vector<64x34xf32> to vector<64x32xf32>
    %144 = vector.extract_strided_slice %142 {offsets = [0, 32], sizes = [64, 2], strides = [1, 1]} : vector<64x34xf32> to vector<64x2xf32>
    %145 = vector.extract_strided_slice %144 {offsets = [0, 0], sizes = [64, 1], strides = [1, 1]} : vector<64x2xf32> to vector<64x1xf32>
    %146 = vector.extract_strided_slice %144 {offsets = [0, 1], sizes = [64, 1], strides = [1, 1]} : vector<64x2xf32> to vector<64x1xf32>
    %147 = tpu.transpose %146, [1, 0] : vector<64x1xf32> -> vector<1x64xf32>
    %148 = vector.broadcast %145 : vector<64x1xf32> to vector<64x64xf32>
    %149 = vector.broadcast %147 : vector<1x64xf32> to vector<64x64xf32>
    %150 = arith.addf %148, %149 : vector<64x64xf32>
    %cst_37 = arith.constant 0.000000e+00 : f32
    %151 = vector.broadcast %cst_37 : f32 to vector<64x64xf32>
    %152 = arith.cmpf ogt, %150, %151 : vector<64x64xf32>
    %cst_38 = arith.constant 2.000000e-01 : f32
    %153 = vector.broadcast %cst_38 : f32 to vector<64x64xf32>
    %154 = arith.mulf %153, %150 : vector<64x64xf32>
    %155 = arith.select %152, %150, %154 : vector<64x64xi1>, vector<64x64xf32>
    %156 = arith.subf %17, %155 : vector<64x64xf32>
    %cst_39 = arith.constant dense<0xFF800000> : vector<64xf32>
    %157 = vector.multi_reduction <maximumf>, %156, %cst_39 [1] : vector<64x64xf32> to vector<64xf32>
    %158 = vector.shape_cast %157 : vector<64xf32> to vector<64x1xf32>
    %159 = vector.broadcast %158 : vector<64x1xf32> to vector<64x64xf32>
    %160 = arith.subf %156, %159 : vector<64x64xf32>
    %161 = math.exp %160 : vector<64x64xf32>
    %cst_40 = arith.constant dense<0.000000e+00> : vector<64xf32>
    %162 = vector.multi_reduction <add>, %161, %cst_40 [1] : vector<64x64xf32> to vector<64xf32>
    %163 = vector.shape_cast %162 : vector<64xf32> to vector<64x1xf32>
    %164 = tpu.reciprocal %163 {approx = true} : vector<64x1xf32> -> vector<64x1xf32>
    %165 = arith.truncf %161 : vector<64x64xf32> to vector<64x64xbf16>
    %166 = arith.truncf %143 : vector<64x32xf32> to vector<64x32xbf16>
    %cst_41 = arith.constant dense<0.000000e+00> : vector<64x32xf32>
    %167 = tpu.matmul %165, %166, %cst_41 {dimension_numbers = #tpu.dot_dimension_numbers<[1], [0], [0], [1], [0, 0, 1, 1], [], []>} : vector<64x64xbf16>, vector<64x32xbf16>, vector<64x32xf32> -> vector<64x32xf32>
    %168 = vector.broadcast %164 : vector<64x1xf32> to vector<64x32xf32>
    %169 = arith.mulf %167, %168 : vector<64x32xf32>
    %170 = tpu.concatenate %42, %169 in 1 : vector<64x32xf32>, vector<64x32xf32> -> vector<64x64xf32>
    %171 = arith.truncf %170 : vector<64x64xf32> to vector<64x64xbf16>
    %c88 = arith.constant 88 : index
    %c0_42 = arith.constant 0 : index
    %172 = vector.load %arg2[%c88, %c0_42] : memref<160x128xf32, #tpu.memory_space<vmem>>, vector<64x16xf32>
    %173 = arith.truncf %172 : vector<64x16xf32> to vector<64x16xbf16>
    %cst_43 = arith.constant dense<0.000000e+00> : vector<64x16xf32>
    %174 = tpu.matmul %171, %173, %cst_43 {dimension_numbers = #tpu.dot_dimension_numbers<[1], [0], [0], [1], [0, 0, 1, 1], [], []>} : vector<64x64xbf16>, vector<64x16xbf16>, vector<64x16xf32> -> vector<64x16xf32>
    %175 = math.tanh %174 : vector<64x16xf32>
    %c0_44 = arith.constant 0 : index
    %c0_45 = arith.constant 0 : index
    %176 = vector.load %arg3[%c0_44, %c0_45] : memref<64x48xf32, #tpu.memory_space<vmem>>, vector<64x32xf32>
    tpu.vector_store %arg3[%c0_44, %c0_45], %0 {strides = array<i32>} : memref<64x48xf32, #tpu.memory_space<vmem>>, vector<64x32xf32>,
    %c0_46 = arith.constant 0 : index
    %c32_47 = arith.constant 32 : index
    %177 = vector.load %arg3[%c0_46, %c32_47] : memref<64x48xf32, #tpu.memory_space<vmem>>, vector<64x16xf32>
    tpu.vector_store %arg3[%c0_46, %c32_47], %175 {strides = array<i32>} : memref<64x48xf32, #tpu.memory_space<vmem>>, vector<64x16xf32>,
    return
  }
}

</mosaic_0001>

<llo_original>
// kernel: tpu_custom_call.1
$region0: #{tpu_custom_call.1}
  #allocation0 [shape = 'u32[]', space=smem, size = 0x4, offset = 0x4, fixed_abs, tag = 'smem constant byte address 0x4 - core index']
  #allocation1 [shape = 'u32[72,128]{1,0:T(1,128)}', space=vmem, size = 0x9000, scoped, tag = 'internal scratch']
  %s0 = inlined_call_operand.vmem [shape: f32[64,32], index: 0, kind: input, shape index: {}]
  %s1 = inlined_call_operand.vmem [shape: f32[64,64], index: 1, kind: input, shape index: {}]
  %s2 = inlined_call_operand.hbm [shape: f32[160,128], index: 2, kind: input, shape index: {}]
  %s3 = inlined_call_operand.vmem [shape: f32[64,48], index: 3, kind: output, shape index: {}]
  %s4 = sld [smem:[#allocation0]]
  $region26: #{tpu_custom_call.1} parent=0
    _
  %s6 = ssub.s32 1, %s4
  %s7 = scalar_select 0, %s6, %s4
  $region1: #{tpu_custom_call.1} parent=0
    #allocation2 [shape = 'u8[81920]{0}', space=vmem, size = 0x14000, scoped, tag = 'input window, operand 2, single buffered']
    #allocation3 [shape = 's32[1]{0}', space=sflag, size = 0x4, scoped, tag = 'scoped memory for tpu_custom_call.1']
    %8 = vsyncpa [#allocation3], 0
    // Predicated region
    $region2: #{tpu_custom_call.1} parent=1 // pred_check
      _
    $region3: #{tpu_custom_call.1} parent=1 // pred_check_branch
      %10 = sbr.rel (0) target = $region5
    $region4: #{tpu_custom_call.1} parent=1 // pred_region
      _
    $region5: #{tpu_custom_call.1} parent=1 // pred_fallthru
      _
    // Predicated region
    $region6: #{tpu_custom_call.1} parent=1 // pred_check
      _
    $region7: #{tpu_custom_call.1} parent=1 // pred_check_branch
      %12 = sbr.rel (0) target = $region9
    $region8: #{tpu_custom_call.1} parent=1 // pred_region
      _
    $region9: #{tpu_custom_call.1} parent=1 // pred_fallthru
      _
    // Predicated region
    $region10: #{tpu_custom_call.1} parent=1 // pred_check
      _
    $region11: #{tpu_custom_call.1} parent=1 // pred_check_branch
      %14 = sbr.rel (0) target = $region13
    $region12: #{tpu_custom_call.1} parent=1 // pred_region
      %16 = vsyncadd [#allocation3], 0
      %s17 = sshll.u32 %s2, 4
      %s18 = int_to_ptr.hbm [resolvable:$true] %s17
      %s19 = sshll.u32 [#allocation2], 4
      %s20 = int_to_ptr.vmem [resolvable:$true] %s19
      %25 = dma.hbm_to_vmem [thread:$0]  %s18, 2560, %s20, [#allocation3], 128, 128, 8
    $region13: #{tpu_custom_call.1} parent=1 // pred_fallthru
      _
    // Predicated region
    $region14: #{tpu_custom_call.1} parent=1 // pred_check
      _
    $region15: #{tpu_custom_call.1} parent=1 // pred_check_branch
      %27 = sbr.rel (0) target = $region17
    $region16: #{tpu_custom_call.1} parent=1 // pred_region
      %29 = dma.done [#allocation3], 2560
    $region17: #{tpu_custom_call.1} parent=1 // pred_fallthru
      _
    %v31 = vld [vmem:[%s0] sm:$0xff]
    %v32 = vld [vmem:[%s0 + $0x8] sm:$0xff]
    %v33 = vld [vmem:[%s0 + $0x10] sm:$0xff]
    %v34 = vld [vmem:[%s0 + $0x18] sm:$0xff]
    %v35 = vld [vmem:[%s0 + $0x20] sm:$0xff]
    %v36 = vld [vmem:[%s0 + $0x28] sm:$0xff]
    %v37 = vld [vmem:[%s0 + $0x30] sm:$0xff]
    %v38 = vld [vmem:[%s0 + $0x38] sm:$0xff]
    %v39 = vpack.c.bf16 %v32, %v31
    %v40 = vpack.c.bf16 %v34, %v33
    %v41 = vpack.c.bf16 %v36, %v35
    %v42 = vpack.c.bf16 %v38, %v37
    %v43 = vld [vmem:[%s1] sm:$0xff]
    %v44 = vld [vmem:[%s1 + $0x8] sm:$0xff]
    %v45 = vld [vmem:[%s1 + $0x10] sm:$0xff]
    %v46 = vld [vmem:[%s1 + $0x18] sm:$0xff]
    %v47 = vld [vmem:[%s1 + $0x20] sm:$0xff]
    %v48 = vld [vmem:[%s1 + $0x28] sm:$0xff]
    %v49 = vld [vmem:[%s1 + $0x30] sm:$0xff]
    %v50 = vld [vmem:[%s1 + $0x38] sm:$0xff]
    %v51 = vlaneseq
    %v52 = vshrl.u32 %v51, 7
    %v53 = vadd.s32 %v52, 8
    %v54 = vadd.s32 %v52, 16
    %v55 = vadd.s32 %v52, 24
    %v56 = vadd.s32 %v52, 32
    %v57 = vadd.s32 %v52, 40
    %v58 = vadd.s32 %v52, 48
    %v59 = vadd.s32 %v52, 56
    %v60 = vlaneseq
    %v61 = vand.u32 %v60, 127
    %vm62 = vcmp.eq.s32.totalorder %v52, %v61
    %vm63 = vcmp.eq.s32.totalorder %v53, %v61
    %vm64 = vcmp.eq.s32.totalorder %v54, %v61
    %vm65 = vcmp.eq.s32.totalorder %v55, %v61
    %vm66 = vcmp.eq.s32.totalorder %v56, %v61
    %vm67 = vcmp.eq.s32.totalorder %v57, %v61
    %vm68 = vcmp.eq.s32.totalorder %v58, %v61
    %vm69 = vcmp.eq.s32.totalorder %v59, %v61
    %v70 = vsel %vm62, 1, 0
    %v71 = vsel %vm63, 1, 0
    %v72 = vsel %vm64, 1, 0
    %v73 = vsel %vm65, 1, 0
    %v74 = vsel %vm66, 1, 0
    %v75 = vsel %vm67, 1, 0
    %v76 = vsel %vm68, 1, 0
    %v77 = vsel %vm69, 1, 0
    %v78 = vcvt.s32.f32 %v70
    %v79 = vcvt.s32.f32 %v71
    %v80 = vcvt.s32.f32 %v72
    %v81 = vcvt.s32.f32 %v73
    %v82 = vcvt.s32.f32 %v74
    %v83 = vcvt.s32.f32 %v75
    %v84 = vcvt.s32.f32 %v76
    %v85 = vcvt.s32.f32 %v77
    %v86 = vadd.f32 %v43, %v78
    %v87 = vadd.f32 %v44, %v79
    %v88 = vadd.f32 %v45, %v80
    %v89 = vadd.f32 %v46, %v81
    %v90 = vadd.f32 %v47, %v82
    %v91 = vadd.f32 %v48, %v83
    %v92 = vadd.f32 %v49, %v84
    %v93 = vadd.f32 %v50, %v85
    %v94 = vpack.c.bf16 %v87, %v86
    %v95 = vpack.c.bf16 %v89, %v88
    %v96 = vpack.c.bf16 %v91, %v90
    %v97 = vpack.c.bf16 %v93, %v92
    %vm98 = vcmask 523264
    %v99 = vsel %vm98, %v86, 0.0
    %100 = vadd.xlane.f32.xlu0 %v99
    %v101 = vpop.xlane.xlu0 %100
    %v102 = vsel %vm98, %v87, 0.0
    %103 = vadd.xlane.f32.xlu0 %v102
    %v104 = vpop.xlane.xlu0 %103
    %v105 = vsel %vm98, %v88, 0.0
    %106 = vadd.xlane.f32.xlu0 %v105
    %v107 = vpop.xlane.xlu0 %106
    %v108 = vsel %vm98, %v89, 0.0
    %109 = vadd.xlane.f32.xlu0 %v108
    %v110 = vpop.xlane.xlu0 %109
    %v111 = vsel %vm98, %v90, 0.0
    %112 = vadd.xlane.f32.xlu0 %v111
    %v113 = vpop.xlane.xlu0 %112
    %v114 = vsel %vm98, %v91, 0.0
    %115 = vadd.xlane.f32.xlu0 %v114
    %v116 = vpop.xlane.xlu0 %115
    %v117 = vsel %vm98, %v92, 0.0
    %118 = vadd.xlane.f32.xlu0 %v117
    %v119 = vpop.xlane.xlu0 %118
    %v120 = vsel %vm98, %v93, 0.0
    %121 = vadd.xlane.f32.xlu0 %v120
    %v122 = vpop.xlane.xlu0 %121
    %v123 = vrcp.pop %v101
    %v124 = vrcp.pop %v104
    %v125 = vrcp.pop %v107
    %v126 = vrcp.pop %v110
    %v127 = vrcp.pop %v113
    %v128 = vrcp.pop %v116
    %v129 = vrcp.pop %v119
    %v130 = vrcp.pop %v122
    %vm131 = vcmp.ne.f32.partialorder %v86, 0.0
    %vm132 = vcmp.ne.f32.partialorder %v87, 0.0
    %vm133 = vcmp.ne.f32.partialorder %v88, 0.0
    %vm134 = vcmp.ne.f32.partialorder %v89, 0.0
    %vm135 = vcmp.ne.f32.partialorder %v90, 0.0
    %vm136 = vcmp.ne.f32.partialorder %v91, 0.0
    %vm137 = vcmp.ne.f32.partialorder %v92, 0.0
    %vm138 = vcmp.ne.f32.partialorder %v93, 0.0
    %v139 = vsel %vm131, 0.0, -inf
    %v140 = vsel %vm132, 0.0, -inf
    %v141 = vsel %vm133, 0.0, -inf
    %v142 = vsel %vm134, 0.0, -inf
    %v143 = vsel %vm135, 0.0, -inf
    %v144 = vsel %vm136, 0.0, -inf
    %v145 = vsel %vm137, 0.0, -inf
    %v146 = vsel %vm138, 0.0, -inf
    %v147 = vld [vmem:[#allocation2 + $0x98] sm:$0x1]
    %v148 = vld [vmem:[#allocation2] sm:$0xff]
    %v149 = vld [vmem:[#allocation2 + $0x8] sm:$0xff]
    %v150 = vld [vmem:[#allocation2 + $0x10] sm:$0xff]
    %v151 = vld [vmem:[#allocation2 + $0x18] sm:$0xff]
    %v152 = vpack.c.bf16 %v149, %v148
    %v153 = vpack.c.bf16 %v151, %v150
    %vm154 = vcmask 261120
    %v156 = vsel %vm154, %v39, 0
    %v159 = vsel %vm154, %v40, 0
    %v162 = vsel %vm154, %v41, 0
    %v165 = vsel %vm154, %v42, 0
    %167 = vmatpush.bf16.msra.mxu0 0
    %168 = vmatpush.bf16.msra.mxu0 0
    %169 = vmatpush.bf16.msra.mxu0 0
    %170 = vmatpush.bf16.msra.mxu0 0
    %171 = vmatpush.bf16.msra.mxu0 0
    %172 = vmatpush.bf16.msra.mxu0 0
    %173 = vmatpush.bf16.msra.mxu0 %v153
    %174 = vmatpush.bf16.msra.mxu0 %v152
    %175 = vmatmul.bf16.gmra.mxu0 %v156
    %v176 = vpop.f32.mrf.mxu0
    %v177 = vadd.f32 0.0, %v176
    %v178 = vpop.f32.mrf.mxu0
    %v179 = vadd.f32 0.0, %v178
    %180 = vmatmul.bf16.gmra.mxu0 %v159
    %v181 = vpop.f32.mrf.mxu0
    %v182 = vadd.f32 0.0, %v181
    %v183 = vpop.f32.mrf.mxu0
    %v184 = vadd.f32 0.0, %v183
    %185 = vmatmul.bf16.gmra.mxu0 %v162
    %v186 = vpop.f32.mrf.mxu0
    %v187 = vadd.f32 0.0, %v186
    %v188 = vpop.f32.mrf.mxu0
    %v189 = vadd.f32 0.0, %v188
    %190 = vmatmul.bf16.gmra.mxu0 %v165
    %v191 = vpop.f32.mrf.mxu0
    %v192 = vadd.f32 0.0, %v191
    %v193 = vpop.f32.mrf.mxu0
    %v194 = vadd.f32 0.0, %v193
    %195 = vdwg.mxu0
    %v196 = vpack.c.bf16 %v179, %v177
    %v197 = vpack.c.bf16 %v184, %v182
    %v198 = vpack.c.bf16 %v189, %v187
    %v199 = vpack.c.bf16 %v194, %v192
    %v201 = vsel %vm98, %v94, 0
    %v204 = vsel %vm98, %v95, 0
    %v207 = vsel %vm98, %v96, 0
    %v210 = vsel %vm98, %v97, 0
    %212 = vmatpush.bf16.msra.mxu0 0
    %213 = vmatpush.bf16.msra.mxu0 0
    %214 = vmatpush.bf16.msra.mxu0 0
    %215 = vmatpush.bf16.msra.mxu0 0
    %216 = vmatpush.bf16.msra.mxu0 %v199
    %217 = vmatpush.bf16.msra.mxu0 %v198
    %218 = vmatpush.bf16.msra.mxu0 %v197
    %219 = vmatpush.bf16.msra.mxu0 %v196
    %220 = vmatmul.bf16.gmra.mxu0 %v201
    %v221 = vpop.f32.mrf.mxu0
    %v222 = vadd.f32 0.0, %v221
    %v223 = vpop.f32.mrf.mxu0
    %v224 = vadd.f32 0.0, %v223
    %225 = vmatmul.bf16.gmra.mxu0 %v204
    %v226 = vpop.f32.mrf.mxu0
    %v227 = vadd.f32 0.0, %v226
    %v228 = vpop.f32.mrf.mxu0
    %v229 = vadd.f32 0.0, %v228
    %230 = vmatmul.bf16.gmra.mxu0 %v207
    %v231 = vpop.f32.mrf.mxu0
    %v232 = vadd.f32 0.0, %v231
    %v233 = vpop.f32.mrf.mxu0
    %v234 = vadd.f32 0.0, %v233
    %235 = vmatmul.bf16.gmra.mxu0 %v210
    %v236 = vpop.f32.mrf.mxu0
    %v237 = vadd.f32 0.0, %v236
    %v238 = vpop.f32.mrf.mxu0
    %v239 = vadd.f32 0.0, %v238
    %240 = vdwg.mxu0
    %v241 = vmul.f32 %v222, %v123
    %v242 = vmul.f32 %v224, %v124
    %v243 = vmul.f32 %v227, %v125
    %v244 = vmul.f32 %v229, %v126
    %v245 = vmul.f32 %v232, %v127
    %v246 = vmul.f32 %v234, %v128
    %v247 = vmul.f32 %v237, %v129
    %v248 = vmul.f32 %v239, %v130
    %v249 = vperm.slane %v147, 0
    %v250 = vadd.f32 %v241, %v249
    %v251 = vadd.f32 %v242, %v249
    %v252 = vadd.f32 %v243, %v249
    %v253 = vadd.f32 %v244, %v249
    %v254 = vadd.f32 %v245, %v249
    %v255 = vadd.f32 %v246, %v249
    %v256 = vadd.f32 %v247, %v249
    %v257 = vadd.f32 %v248, %v249
    %v258 = vpack.c.bf16 %v251, %v250
    %v259 = vpack.c.bf16 %v253, %v252
    %v260 = vpack.c.bf16 %v255, %v254
    %v261 = vpack.c.bf16 %v257, %v256
    %v262 = vld [vmem:[#allocation2 + $0x20] sm:$0xff]
    %v263 = vld [vmem:[#allocation2 + $0x28] sm:$0xff]
    %v264 = vld [vmem:[#allocation2 + $0x30] sm:$0xff]
    %v265 = vld [vmem:[#allocation2 + $0x38] sm:$0xff]
    %v266 = vpack.c.bf16 %v263, %v262
    %v267 = vpack.c.bf16 %v265, %v264
    %v269 = vsel %vm154, %v258, 0
    %v272 = vsel %vm154, %v259, 0
    %v275 = vsel %vm154, %v260, 0
    %v278 = vsel %vm154, %v261, 0
    %280 = vmatpush.bf16.msra.mxu0 0
    %281 = vmatpush.bf16.msra.mxu0 0
    %282 = vmatpush.bf16.msra.mxu0 0
    %283 = vmatpush.bf16.msra.mxu0 0
    %284 = vmatpush.bf16.msra.mxu0 0
    %285 = vmatpush.bf16.msra.mxu0 0
    %286 = vmatpush.bf16.msra.mxu0 %v267
    %287 = vmatpush.bf16.msra.mxu0 %v266
    %288 = vmatmul.bf16.gmra.mxu0 %v269
    %v289 = vpop.f32.mrf.mxu0
    %v290 = vadd.f32 0.0, %v289
    %v291 = vpop.f32.mrf.mxu0
    %v292 = vadd.f32 0.0, %v291
    %293 = vmatmul.bf16.gmra.mxu0 %v272
    %v294 = vpop.f32.mrf.mxu0
    %v295 = vadd.f32 0.0, %v294
    %v296 = vpop.f32.mrf.mxu0
    %v297 = vadd.f32 0.0, %v296
    %298 = vmatmul.bf16.gmra.mxu0 %v275
    %v299 = vpop.f32.mrf.mxu0
    %v300 = vadd.f32 0.0, %v299
    %v301 = vpop.f32.mrf.mxu0
    %v302 = vadd.f32 0.0, %v301
    %303 = vmatmul.bf16.gmra.mxu0 %v278
    %v304 = vpop.f32.mrf.mxu0
    %v305 = vadd.f32 0.0, %v304
    %v306 = vpop.f32.mrf.mxu0
    %v307 = vadd.f32 0.0, %v306
    %308 = vdwg.mxu0
    %v309 = vpack.c.bf16 %v292, %v290
    %v310 = vpack.c.bf16 %v297, %v295
    %v311 = vpack.c.bf16 %v302, %v300
    %v312 = vpack.c.bf16 %v307, %v305
    %313 = vmatpush.bf16.msra.mxu0 0
    %314 = vmatpush.bf16.msra.mxu0 0
    %315 = vmatpush.bf16.msra.mxu0 0
    %316 = vmatpush.bf16.msra.mxu0 0
    %317 = vmatpush.bf16.msra.mxu0 %v312
    %318 = vmatpush.bf16.msra.mxu0 %v311
    %319 = vmatpush.bf16.msra.mxu0 %v310
    %320 = vmatpush.bf16.msra.mxu0 %v309
    %321 = vmatmul.bf16.gmra.mxu0 %v201
    %v322 = vpop.f32.mrf.mxu0
    %v323 = vadd.f32 0.0, %v322
    %v324 = vpop.f32.mrf.mxu0
    %v325 = vadd.f32 0.0, %v324
    %326 = vmatmul.bf16.gmra.mxu0 %v204
    %v327 = vpop.f32.mrf.mxu0
    %v328 = vadd.f32 0.0, %v327
    %v329 = vpop.f32.mrf.mxu0
    %v330 = vadd.f32 0.0, %v329
    %331 = vmatmul.bf16.gmra.mxu0 %v207
    %v332 = vpop.f32.mrf.mxu0
    %v333 = vadd.f32 0.0, %v332
    %v334 = vpop.f32.mrf.mxu0
    %v335 = vadd.f32 0.0, %v334
    %336 = vmatmul.bf16.gmra.mxu0 %v210
    %v337 = vpop.f32.mrf.mxu0
    %v338 = vadd.f32 0.0, %v337
    %v339 = vpop.f32.mrf.mxu0
    %v340 = vadd.f32 0.0, %v339
    %341 = vdwg.mxu0
    %v342 = vmul.f32 %v323, %v123
    %v343 = vmul.f32 %v325, %v124
    %v344 = vmul.f32 %v328, %v125
    %v345 = vmul.f32 %v330, %v126
    %v346 = vmul.f32 %v333, %v127
    %v347 = vmul.f32 %v335, %v128
    %v348 = vmul.f32 %v338, %v129
    %v349 = vmul.f32 %v340, %v130
    %351 = vrot.lane.b32.xlu0 %v249, 96
    %v352 = vpop.permute.xlu0 %351
    %v354 = vadd.f32 %v342, %v352
    %v355 = vadd.f32 %v343, %v352
    %v356 = vadd.f32 %v344, %v352
    %v357 = vadd.f32 %v345, %v352
    %v358 = vadd.f32 %v346, %v352
    %v359 = vadd.f32 %v347, %v352
    %v360 = vadd.f32 %v348, %v352
    %v361 = vadd.f32 %v349, %v352
    %370 = vrot.lane.b32.xlu0 %v177, 69
    %v371 = vpop.permute.xlu0 %370
    %372 = vrot.lane.b32.xlu0 %v179, 69
    %v373 = vpop.permute.xlu0 %372
    %374 = vrot.lane.b32.xlu0 %v182, 69
    %v375 = vpop.permute.xlu0 %374
    %376 = vrot.lane.b32.xlu0 %v184, 69
    %v377 = vpop.permute.xlu0 %376
    %378 = vrot.lane.b32.xlu0 %v187, 69
    %v379 = vpop.permute.xlu0 %378
    %380 = vrot.lane.b32.xlu0 %v189, 69
    %v381 = vpop.permute.xlu0 %380
    %382 = vrot.lane.b32.xlu0 %v192, 69
    %v383 = vpop.permute.xlu0 %382
    %384 = vrot.lane.b32.xlu0 %v194, 69
    %v385 = vpop.permute.xlu0 %384
    %394 = vxpose.xlu0.b32.start [1/16] %v371, 128
    %395 = vxpose.xlu0.b32.cont [2/16] %v373, 128
    %396 = vxpose.xlu0.b32.cont [3/16] %v375, 128
    %397 = vxpose.xlu0.b32.cont [4/16] %v377, 128
    %398 = vxpose.xlu0.b32.cont [5/16] %v379, 128
    %399 = vxpose.xlu0.b32.cont [6/16] %v381, 128
    %400 = vxpose.xlu0.b32.cont [7/16] %v383, 128
    %401 = vxpose.xlu0.b32.cont [8/16] %v385, 128
    %402 = vxpose.xlu0.b32.cont [9/16] 0.0, 128
    %403 = vxpose.xlu0.b32.cont [10/16] 0.0, 128
    %404 = vxpose.xlu0.b32.cont [11/16] 0.0, 128
    %405 = vxpose.xlu0.b32.cont [12/16] 0.0, 128
    %406 = vxpose.xlu0.b32.cont [13/16] 0.0, 128
    %407 = vxpose.xlu0.b32.cont [14/16] 0.0, 128
    %408 = vxpose.xlu0.b32.cont [15/16] 0.0, 128
    %409 = vxpose.xlu0.b32.end [16/16] 0.0, 128
    %v410 = vpop.trf.xlu0
    %v411 = vpop.trf.xlu0
    %v412 = vpop.trf.xlu0
    %v413 = vpop.trf.xlu0
    %v414 = vpop.trf.xlu0
    %v415 = vpop.trf.xlu0
    %v416 = vpop.trf.xlu0
    %v417 = vpop.trf.xlu0
    %v418 = vpop.trf.xlu0
    %v419 = vpop.trf.xlu0
    %v420 = vpop.trf.xlu0
    %v421 = vpop.trf.xlu0
    %v422 = vpop.trf.xlu0
    %v423 = vpop.trf.xlu0
    %v424 = vpop.trf.xlu0
    %v425 = vpop.trf.xlu0
    %426 = vset.pattern.permute.xlu0 56
    %427 = vperm.xlu0 %426, %v177
    %v428 = vpop.permute.xlu0 %427
    %430 = vset.pattern.permute.xlu0 56
    %431 = vperm.xlu0 %430, %v179
    %v432 = vpop.permute.xlu0 %431
    %434 = vset.pattern.permute.xlu0 56
    %435 = vperm.xlu0 %434, %v182
    %v436 = vpop.permute.xlu0 %435
    %438 = vset.pattern.permute.xlu0 56
    %439 = vperm.xlu0 %438, %v184
    %v440 = vpop.permute.xlu0 %439
    %442 = vset.pattern.permute.xlu0 56
    %443 = vperm.xlu0 %442, %v187
    %v444 = vpop.permute.xlu0 %443
    %446 = vset.pattern.permute.xlu0 56
    %447 = vperm.xlu0 %446, %v189
    %v448 = vpop.permute.xlu0 %447
    %450 = vset.pattern.permute.xlu0 56
    %451 = vperm.xlu0 %450, %v192
    %v452 = vpop.permute.xlu0 %451
    %454 = vset.pattern.permute.xlu0 56
    %455 = vperm.xlu0 %454, %v194
    %v456 = vpop.permute.xlu0 %455
    %v458 = vperm.slane %v410, 0
    %v459 = vadd.f32 %v428, %v458
    %v460 = vadd.f32 %v432, %v458
    %v461 = vadd.f32 %v436, %v458
    %v462 = vadd.f32 %v440, %v458
    %v463 = vadd.f32 %v444, %v458
    %v464 = vadd.f32 %v448, %v458
    %v465 = vadd.f32 %v452, %v458
    %v466 = vadd.f32 %v456, %v458
    %vm467 = vcmp.gt.f32.partialorder %v459, 0.0
    %vm468 = vcmp.gt.f32.partialorder %v460, 0.0
    %vm469 = vcmp.gt.f32.partialorder %v461, 0.0
    %vm470 = vcmp.gt.f32.partialorder %v462, 0.0
    %vm471 = vcmp.gt.f32.partialorder %v463, 0.0
    %vm472 = vcmp.gt.f32.partialorder %v464, 0.0
    %vm473 = vcmp.gt.f32.partialorder %v465, 0.0
    %vm474 = vcmp.gt.f32.partialorder %v466, 0.0
    %v475 = vmul.f32 %v459, 0.2
    %v476 = vmul.f32 %v460, 0.2
    %v477 = vmul.f32 %v461, 0.2
    %v478 = vmul.f32 %v462, 0.2
    %v479 = vmul.f32 %v463, 0.2
    %v480 = vmul.f32 %v464, 0.2
    %v481 = vmul.f32 %v465, 0.2
    %v482 = vmul.f32 %v466, 0.2
    %v483 = vsel %vm467, %v459, %v475
    %v484 = vsel %vm468, %v460, %v476
    %v485 = vsel %vm469, %v461, %v477
    %v486 = vsel %vm470, %v462, %v478
    %v487 = vsel %vm471, %v463, %v479
    %v488 = vsel %vm472, %v464, %v480
    %v489 = vsel %vm473, %v465, %v481
    %v490 = vsel %vm474, %v466, %v482
    %v491 = vsub.f32 %v139, %v483
    %v492 = vsub.f32 %v140, %v484
    %v493 = vsub.f32 %v141, %v485
    %v494 = vsub.f32 %v142, %v486
    %v495 = vsub.f32 %v143, %v487
    %v496 = vsub.f32 %v144, %v488
    %v497 = vsub.f32 %v145, %v489
    %v498 = vsub.f32 %v146, %v490
    %v499 = vsel %vm98, %v491, -inf
    %500 = vmax.xlane.f32.xlu0 %v499
    %v501 = vpop.xlane.xlu0 %500
    %v502 = vsel %vm98, %v492, -inf
    %503 = vmax.xlane.f32.xlu0 %v502
    %v504 = vpop.xlane.xlu0 %503
    %v505 = vsel %vm98, %v493, -inf
    %506 = vmax.xlane.f32.xlu0 %v505
    %v507 = vpop.xlane.xlu0 %506
    %v508 = vsel %vm98, %v494, -inf
    %509 = vmax.xlane.f32.xlu0 %v508
    %v510 = vpop.xlane.xlu0 %509
    %v511 = vsel %vm98, %v495, -inf
    %512 = vmax.xlane.f32.xlu0 %v511
    %v513 = vpop.xlane.xlu0 %512
    %v514 = vsel %vm98, %v496, -inf
    %515 = vmax.xlane.f32.xlu0 %v514
    %v516 = vpop.xlane.xlu0 %515
    %v517 = vsel %vm98, %v497, -inf
    %518 = vmax.xlane.f32.xlu0 %v517
    %v519 = vpop.xlane.xlu0 %518
    %v520 = vsel %vm98, %v498, -inf
    %521 = vmax.xlane.f32.xlu0 %v520
    %v522 = vpop.xlane.xlu0 %521
    %v523 = vsub.f32 %v491, %v501
    %v524 = vsub.f32 %v492, %v504
    %v525 = vsub.f32 %v493, %v507
    %v526 = vsub.f32 %v494, %v510
    %v527 = vsub.f32 %v495, %v513
    %v528 = vsub.f32 %v496, %v516
    %v529 = vsub.f32 %v497, %v519
    %v530 = vsub.f32 %v498, %v522
    %v531 = vmul.f32 %v523, 1.442695
    %v532 = vpow.pop %v531
    %v533 = vmul.f32 %v524, 1.442695
    %v534 = vpow.pop %v533
    %v535 = vmul.f32 %v525, 1.442695
    %v536 = vpow.pop %v535
    %v537 = vmul.f32 %v526, 1.442695
    %v538 = vpow.pop %v537
    %v539 = vmul.f32 %v527, 1.442695
    %v540 = vpow.pop %v539
    %v541 = vmul.f32 %v528, 1.442695
    %v542 = vpow.pop %v541
    %v543 = vmul.f32 %v529, 1.442695
    %v544 = vpow.pop %v543
    %v545 = vmul.f32 %v530, 1.442695
    %v546 = vpow.pop %v545
    %v547 = vsel %vm98, %v532, 0.0
    %548 = vadd.xlane.f32.xlu0 %v547
    %v549 = vpop.xlane.xlu0 %548
    %v550 = vsel %vm98, %v534, 0.0
    %551 = vadd.xlane.f32.xlu0 %v550
    %v552 = vpop.xlane.xlu0 %551
    %v553 = vsel %vm98, %v536, 0.0
    %554 = vadd.xlane.f32.xlu0 %v553
    %v555 = vpop.xlane.xlu0 %554
    %v556 = vsel %vm98, %v538, 0.0
    %557 = vadd.xlane.f32.xlu0 %v556
    %v558 = vpop.xlane.xlu0 %557
    %v559 = vsel %vm98, %v540, 0.0
    %560 = vadd.xlane.f32.xlu0 %v559
    %v561 = vpop.xlane.xlu0 %560
    %v562 = vsel %vm98, %v542, 0.0
    %563 = vadd.xlane.f32.xlu0 %v562
    %v564 = vpop.xlane.xlu0 %563
    %v565 = vsel %vm98, %v544, 0.0
    %566 = vadd.xlane.f32.xlu0 %v565
    %v567 = vpop.xlane.xlu0 %566
    %v568 = vsel %vm98, %v546, 0.0
    %569 = vadd.xlane.f32.xlu0 %v568
    %v570 = vpop.xlane.xlu0 %569
    %v571 = vrcp.pop %v549
    %v572 = vrcp.pop %v552
    %v573 = vrcp.pop %v555
    %v574 = vrcp.pop %v558
    %v575 = vrcp.pop %v561
    %v576 = vrcp.pop %v564
    %v577 = vrcp.pop %v567
    %v578 = vrcp.pop %v570
    %v579 = vpack.c.bf16 %v534, %v532
    %v580 = vpack.c.bf16 %v538, %v536
    %v581 = vpack.c.bf16 %v542, %v540
    %v582 = vpack.c.bf16 %v546, %v544
    %587 = vrot.lane.b32.xlu0 %v196, 96
    %v588 = vpop.permute.xlu0 %587
    %589 = vrot.lane.b32.xlu0 %v197, 96
    %v590 = vpop.permute.xlu0 %589
    %591 = vrot.lane.b32.xlu0 %v198, 96
    %v592 = vpop.permute.xlu0 %591
    %593 = vrot.lane.b32.xlu0 %v199, 96
    %v594 = vpop.permute.xlu0 %593
    %v600 = vsel %vm98, %v579, 0
    %v603 = vsel %vm98, %v580, 0
    %v606 = vsel %vm98, %v581, 0
    %v609 = vsel %vm98, %v582, 0
    %611 = vmatpush.bf16.msra.mxu0 0
    %612 = vmatpush.bf16.msra.mxu0 0
    %613 = vmatpush.bf16.msra.mxu0 0
    %614 = vmatpush.bf16.msra.mxu0 0
    %615 = vmatpush.bf16.msra.mxu0 %v594
    %616 = vmatpush.bf16.msra.mxu0 %v592
    %617 = vmatpush.bf16.msra.mxu0 %v590
    %618 = vmatpush.bf16.msra.mxu0 %v588
    %619 = vmatmul.bf16.gmra.mxu0 %v600
    %v620 = vpop.f32.mrf.mxu0
    %v621 = vadd.f32 0.0, %v620
    %v622 = vpop.f32.mrf.mxu0
    %v623 = vadd.f32 0.0, %v622
    %624 = vmatmul.bf16.gmra.mxu0 %v603
    %v625 = vpop.f32.mrf.mxu0
    %v626 = vadd.f32 0.0, %v625
    %v627 = vpop.f32.mrf.mxu0
    %v628 = vadd.f32 0.0, %v627
    %629 = vmatmul.bf16.gmra.mxu0 %v606
    %v630 = vpop.f32.mrf.mxu0
    %v631 = vadd.f32 0.0, %v630
    %v632 = vpop.f32.mrf.mxu0
    %v633 = vadd.f32 0.0, %v632
    %634 = vmatmul.bf16.gmra.mxu0 %v609
    %v635 = vpop.f32.mrf.mxu0
    %v636 = vadd.f32 0.0, %v635
    %v637 = vpop.f32.mrf.mxu0
    %v638 = vadd.f32 0.0, %v637
    %639 = vdwg.mxu0
    %v640 = vmul.f32 %v621, %v571
    %v641 = vmul.f32 %v623, %v572
    %v642 = vmul.f32 %v626, %v573
    %v643 = vmul.f32 %v628, %v574
    %v644 = vmul.f32 %v631, %v575
    %v645 = vmul.f32 %v633, %v576
    %v646 = vmul.f32 %v636, %v577
    %v647 = vmul.f32 %v638, %v578
    %vm648 = vcmp.gt.f32.partialorder %v640, 0.0
    %vm649 = vcmp.gt.f32.partialorder %v641, 0.0
    %vm650 = vcmp.gt.f32.partialorder %v642, 0.0
    %vm651 = vcmp.gt.f32.partialorder %v643, 0.0
    %vm652 = vcmp.gt.f32.partialorder %v644, 0.0
    %vm653 = vcmp.gt.f32.partialorder %v645, 0.0
    %vm654 = vcmp.gt.f32.partialorder %v646, 0.0
    %vm655 = vcmp.gt.f32.partialorder %v647, 0.0
    %v656 = vmul.f32 %v640, 1.442695
    %v657 = vpow.pop %v656
    %v658 = vmul.f32 %v641, 1.442695
    %v659 = vpow.pop %v658
    %v660 = vmul.f32 %v642, 1.442695
    %v661 = vpow.pop %v660
    %v662 = vmul.f32 %v643, 1.442695
    %v663 = vpow.pop %v662
    %v664 = vmul.f32 %v644, 1.442695
    %v665 = vpow.pop %v664
    %v666 = vmul.f32 %v645, 1.442695
    %v667 = vpow.pop %v666
    %v668 = vmul.f32 %v646, 1.442695
    %v669 = vpow.pop %v668
    %v670 = vmul.f32 %v647, 1.442695
    %v671 = vpow.pop %v670
    %v672 = vsub.f32 %v657, 1.0
    %v673 = vsub.f32 %v659, 1.0
    %v674 = vsub.f32 %v661, 1.0
    %v675 = vsub.f32 %v663, 1.0
    %v676 = vsub.f32 %v665, 1.0
    %v677 = vsub.f32 %v667, 1.0
    %v678 = vsub.f32 %v669, 1.0
    %v679 = vsub.f32 %v671, 1.0
    %v680 = vsel %vm648, %v640, %v672
    %v681 = vsel %vm649, %v641, %v673
    %v682 = vsel %vm650, %v642, %v674
    %v683 = vsel %vm651, %v643, %v675
    %v684 = vsel %vm652, %v644, %v676
    %v685 = vsel %vm653, %v645, %v677
    %v686 = vsel %vm654, %v646, %v678
    %v687 = vsel %vm655, %v647, %v679
    %688 = vset.pattern.permute.xlu0 57
    %689 = vperm.xlu0 %688, %v177
    %v690 = vpop.permute.xlu0 %689
    %692 = vset.pattern.permute.xlu0 57
    %693 = vperm.xlu0 %692, %v179
    %v694 = vpop.permute.xlu0 %693
    %696 = vset.pattern.permute.xlu0 57
    %697 = vperm.xlu0 %696, %v182
    %v698 = vpop.permute.xlu0 %697
    %700 = vset.pattern.permute.xlu0 57
    %701 = vperm.xlu0 %700, %v184
    %v702 = vpop.permute.xlu0 %701
    %704 = vset.pattern.permute.xlu0 57
    %705 = vperm.xlu0 %704, %v187
    %v706 = vpop.permute.xlu0 %705
    %708 = vset.pattern.permute.xlu0 57
    %709 = vperm.xlu0 %708, %v189
    %v710 = vpop.permute.xlu0 %709
    %712 = vset.pattern.permute.xlu0 57
    %713 = vperm.xlu0 %712, %v192
    %v714 = vpop.permute.xlu0 %713
    %716 = vset.pattern.permute.xlu0 57
    %717 = vperm.xlu0 %716, %v194
    %v718 = vpop.permute.xlu0 %717
    %v720 = vperm.slane %v410, 1
    %v721 = vadd.f32 %v690, %v720
    %v722 = vadd.f32 %v694, %v720
    %v723 = vadd.f32 %v698, %v720
    %v724 = vadd.f32 %v702, %v720
    %v725 = vadd.f32 %v706, %v720
    %v726 = vadd.f32 %v710, %v720
    %v727 = vadd.f32 %v714, %v720
    %v728 = vadd.f32 %v718, %v720
    %vm729 = vcmp.gt.f32.partialorder %v721, 0.0
    %vm730 = vcmp.gt.f32.partialorder %v722, 0.0
    %vm731 = vcmp.gt.f32.partialorder %v723, 0.0
    %vm732 = vcmp.gt.f32.partialorder %v724, 0.0
    %vm733 = vcmp.gt.f32.partialorder %v725, 0.0
    %vm734 = vcmp.gt.f32.partialorder %v726, 0.0
    %vm735 = vcmp.gt.f32.partialorder %v727, 0.0
    %vm736 = vcmp.gt.f32.partialorder %v728, 0.0
    %v737 = vmul.f32 %v721, 0.2
    %v738 = vmul.f32 %v722, 0.2
    %v739 = vmul.f32 %v723, 0.2
    %v740 = vmul.f32 %v724, 0.2
    %v741 = vmul.f32 %v725, 0.2
    %v742 = vmul.f32 %v726, 0.2
    %v743 = vmul.f32 %v727, 0.2
    %v744 = vmul.f32 %v728, 0.2
    %v745 = vsel %vm729, %v721, %v737
    %v746 = vsel %vm730, %v722, %v738
    %v747 = vsel %vm731, %v723, %v739
    %v748 = vsel %vm732, %v724, %v740
    %v749 = vsel %vm733, %v725, %v741
    %v750 = vsel %vm734, %v726, %v742
    %v751 = vsel %vm735, %v727, %v743
    %v752 = vsel %vm736, %v728, %v744
    %v753 = vsub.f32 %v139, %v745
    %v754 = vsub.f32 %v140, %v746
    %v755 = vsub.f32 %v141, %v747
    %v756 = vsub.f32 %v142, %v748
    %v757 = vsub.f32 %v143, %v749
    %v758 = vsub.f32 %v144, %v750
    %v759 = vsub.f32 %v145, %v751
    %v760 = vsub.f32 %v146, %v752
    %v761 = vsel %vm98, %v753, -inf
    %762 = vmax.xlane.f32.xlu0 %v761
    %v763 = vpop.xlane.xlu0 %762
    %v764 = vsel %vm98, %v754, -inf
    %765 = vmax.xlane.f32.xlu0 %v764
    %v766 = vpop.xlane.xlu0 %765
    %v767 = vsel %vm98, %v755, -inf
    %768 = vmax.xlane.f32.xlu0 %v767
    %v769 = vpop.xlane.xlu0 %768
    %v770 = vsel %vm98, %v756, -inf
    %771 = vmax.xlane.f32.xlu0 %v770
    %v772 = vpop.xlane.xlu0 %771
    %v773 = vsel %vm98, %v757, -inf
    %774 = vmax.xlane.f32.xlu0 %v773
    %v775 = vpop.xlane.xlu0 %774
    %v776 = vsel %vm98, %v758, -inf
    %777 = vmax.xlane.f32.xlu0 %v776
    %v778 = vpop.xlane.xlu0 %777
    %v779 = vsel %vm98, %v759, -inf
    %780 = vmax.xlane.f32.xlu0 %v779
    %v781 = vpop.xlane.xlu0 %780
    %v782 = vsel %vm98, %v760, -inf
    %783 = vmax.xlane.f32.xlu0 %v782
    %v784 = vpop.xlane.xlu0 %783
    %v785 = vsub.f32 %v753, %v763
    %v786 = vsub.f32 %v754, %v766
    %v787 = vsub.f32 %v755, %v769
    %v788 = vsub.f32 %v756, %v772
    %v789 = vsub.f32 %v757, %v775
    %v790 = vsub.f32 %v758, %v778
    %v791 = vsub.f32 %v759, %v781
    %v792 = vsub.f32 %v760, %v784
    %v793 = vmul.f32 %v785, 1.442695
    %v794 = vpow.pop %v793
    %v795 = vmul.f32 %v786, 1.442695
    %v796 = vpow.pop %v795
    %v797 = vmul.f32 %v787, 1.442695
    %v798 = vpow.pop %v797
    %v799 = vmul.f32 %v788, 1.442695
    %v800 = vpow.pop %v799
    %v801 = vmul.f32 %v789, 1.442695
    %v802 = vpow.pop %v801
    %v803 = vmul.f32 %v790, 1.442695
    %v804 = vpow.pop %v803
    %v805 = vmul.f32 %v791, 1.442695
    %v806 = vpow.pop %v805
    %v807 = vmul.f32 %v792, 1.442695
    %v808 = vpow.pop %v807
    %v809 = vsel %vm98, %v794, 0.0
    %810 = vadd.xlane.f32.xlu0 %v809
    %v811 = vpop.xlane.xlu0 %810
    %v812 = vsel %vm98, %v796, 0.0
    %813 = vadd.xlane.f32.xlu0 %v812
    %v814 = vpop.xlane.xlu0 %813
    %v815 = vsel %vm98, %v798, 0.0
    %816 = vadd.xlane.f32.xlu0 %v815
    %v817 = vpop.xlane.xlu0 %816
    %v818 = vsel %vm98, %v800, 0.0
    %819 = vadd.xlane.f32.xlu0 %v818
    %v820 = vpop.xlane.xlu0 %819
    %v821 = vsel %vm98, %v802, 0.0
    %822 = vadd.xlane.f32.xlu0 %v821
    %v823 = vpop.xlane.xlu0 %822
    %v824 = vsel %vm98, %v804, 0.0
    %825 = vadd.xlane.f32.xlu0 %v824
    %v826 = vpop.xlane.xlu0 %825
    %v827 = vsel %vm98, %v806, 0.0
    %828 = vadd.xlane.f32.xlu0 %v827
    %v829 = vpop.xlane.xlu0 %828
    %v830 = vsel %vm98, %v808, 0.0
    %831 = vadd.xlane.f32.xlu0 %v830
    %v832 = vpop.xlane.xlu0 %831
    %v833 = vrcp.pop %v811
    %v834 = vrcp.pop %v814
    %v835 = vrcp.pop %v817
    %v836 = vrcp.pop %v820
    %v837 = vrcp.pop %v823
    %v838 = vrcp.pop %v826
    %v839 = vrcp.pop %v829
    %v840 = vrcp.pop %v832
    %v841 = vpack.c.bf16 %v796, %v794
    %v842 = vpack.c.bf16 %v800, %v798
    %v843 = vpack.c.bf16 %v804, %v802
    %v844 = vpack.c.bf16 %v808, %v806
    %845 = vrot.lane.b32.xlu0 %v196, 88
    %v846 = vpop.permute.xlu0 %845
    %847 = vrot.lane.b32.xlu0 %v197, 88
    %v848 = vpop.permute.xlu0 %847
    %849 = vrot.lane.b32.xlu0 %v198, 88
    %v850 = vpop.permute.xlu0 %849
    %851 = vrot.lane.b32.xlu0 %v199, 88
    %v852 = vpop.permute.xlu0 %851
    %v858 = vsel %vm98, %v841, 0
    %v861 = vsel %vm98, %v842, 0
    %v864 = vsel %vm98, %v843, 0
    %v867 = vsel %vm98, %v844, 0
    %869 = vmatpush.bf16.msra.mxu0 0
    %870 = vmatpush.bf16.msra.mxu0 0
    %871 = vmatpush.bf16.msra.mxu0 0
    %872 = vmatpush.bf16.msra.mxu0 0
    %873 = vmatpush.bf16.msra.mxu0 %v852
    %874 = vmatpush.bf16.msra.mxu0 %v850
    %875 = vmatpush.bf16.msra.mxu0 %v848
    %876 = vmatpush.bf16.msra.mxu0 %v846
    %877 = vmatmul.bf16.gmra.mxu0 %v858
    %v878 = vpop.f32.mrf.mxu0
    %v879 = vadd.f32 0.0, %v878
    %v880 = vpop.f32.mrf.mxu0
    %v881 = vadd.f32 0.0, %v880
    %882 = vmatmul.bf16.gmra.mxu0 %v861
    %v883 = vpop.f32.mrf.mxu0
    %v884 = vadd.f32 0.0, %v883
    %v885 = vpop.f32.mrf.mxu0
    %v886 = vadd.f32 0.0, %v885
    %887 = vmatmul.bf16.gmra.mxu0 %v864
    %v888 = vpop.f32.mrf.mxu0
    %v889 = vadd.f32 0.0, %v888
    %v890 = vpop.f32.mrf.mxu0
    %v891 = vadd.f32 0.0, %v890
    %892 = vmatmul.bf16.gmra.mxu0 %v867
    %v893 = vpop.f32.mrf.mxu0
    %v894 = vadd.f32 0.0, %v893
    %v895 = vpop.f32.mrf.mxu0
    %v896 = vadd.f32 0.0, %v895
    %897 = vdwg.mxu0
    %v898 = vmul.f32 %v879, %v833
    %v899 = vmul.f32 %v881, %v834
    %v900 = vmul.f32 %v884, %v835
    %v901 = vmul.f32 %v886, %v836
    %v902 = vmul.f32 %v889, %v837
    %v903 = vmul.f32 %v891, %v838
    %v904 = vmul.f32 %v894, %v839
    %v905 = vmul.f32 %v896, %v840
    %vm906 = vcmp.gt.f32.partialorder %v898, 0.0
    %vm907 = vcmp.gt.f32.partialorder %v899, 0.0
    %vm908 = vcmp.gt.f32.partialorder %v900, 0.0
    %vm909 = vcmp.gt.f32.partialorder %v901, 0.0
    %vm910 = vcmp.gt.f32.partialorder %v902, 0.0
    %vm911 = vcmp.gt.f32.partialorder %v903, 0.0
    %vm912 = vcmp.gt.f32.partialorder %v904, 0.0
    %vm913 = vcmp.gt.f32.partialorder %v905, 0.0
    %v914 = vmul.f32 %v898, 1.442695
    %v915 = vpow.pop %v914
    %v916 = vmul.f32 %v899, 1.442695
    %v917 = vpow.pop %v916
    %v918 = vmul.f32 %v900, 1.442695
    %v919 = vpow.pop %v918
    %v920 = vmul.f32 %v901, 1.442695
    %v921 = vpow.pop %v920
    %v922 = vmul.f32 %v902, 1.442695
    %v923 = vpow.pop %v922
    %v924 = vmul.f32 %v903, 1.442695
    %v925 = vpow.pop %v924
    %v926 = vmul.f32 %v904, 1.442695
    %v927 = vpow.pop %v926
    %v928 = vmul.f32 %v905, 1.442695
    %v929 = vpow.pop %v928
    %v930 = vsub.f32 %v915, 1.0
    %v931 = vsub.f32 %v917, 1.0
    %v932 = vsub.f32 %v919, 1.0
    %v933 = vsub.f32 %v921, 1.0
    %v934 = vsub.f32 %v923, 1.0
    %v935 = vsub.f32 %v925, 1.0
    %v936 = vsub.f32 %v927, 1.0
    %v937 = vsub.f32 %v929, 1.0
    %v938 = vsel %vm906, %v898, %v930
    %v939 = vsel %vm907, %v899, %v931
    %v940 = vsel %vm908, %v900, %v932
    %v941 = vsel %vm909, %v901, %v933
    %v942 = vsel %vm910, %v902, %v934
    %v943 = vsel %vm911, %v903, %v935
    %v944 = vsel %vm912, %v904, %v936
    %v945 = vsel %vm913, %v905, %v937
    %946 = vset.pattern.permute.xlu0 58
    %947 = vperm.xlu0 %946, %v177
    %v948 = vpop.permute.xlu0 %947
    %950 = vset.pattern.permute.xlu0 58
    %951 = vperm.xlu0 %950, %v179
    %v952 = vpop.permute.xlu0 %951
    %954 = vset.pattern.permute.xlu0 58
    %955 = vperm.xlu0 %954, %v182
    %v956 = vpop.permute.xlu0 %955
    %958 = vset.pattern.permute.xlu0 58
    %959 = vperm.xlu0 %958, %v184
    %v960 = vpop.permute.xlu0 %959
    %962 = vset.pattern.permute.xlu0 58
    %963 = vperm.xlu0 %962, %v187
    %v964 = vpop.permute.xlu0 %963
    %966 = vset.pattern.permute.xlu0 58
    %967 = vperm.xlu0 %966, %v189
    %v968 = vpop.permute.xlu0 %967
    %970 = vset.pattern.permute.xlu0 58
    %971 = vperm.xlu0 %970, %v192
    %v972 = vpop.permute.xlu0 %971
    %974 = vset.pattern.permute.xlu0 58
    %975 = vperm.xlu0 %974, %v194
    %v976 = vpop.permute.xlu0 %975
    %v978 = vperm.slane %v410, 2
    %v979 = vadd.f32 %v948, %v978
    %v980 = vadd.f32 %v952, %v978
    %v981 = vadd.f32 %v956, %v978
    %v982 = vadd.f32 %v960, %v978
    %v983 = vadd.f32 %v964, %v978
    %v984 = vadd.f32 %v968, %v978
    %v985 = vadd.f32 %v972, %v978
    %v986 = vadd.f32 %v976, %v978
    %vm987 = vcmp.gt.f32.partialorder %v979, 0.0
    %vm988 = vcmp.gt.f32.partialorder %v980, 0.0
    %vm989 = vcmp.gt.f32.partialorder %v981, 0.0
    %vm990 = vcmp.gt.f32.partialorder %v982, 0.0
    %vm991 = vcmp.gt.f32.partialorder %v983, 0.0
    %vm992 = vcmp.gt.f32.partialorder %v984, 0.0
    %vm993 = vcmp.gt.f32.partialorder %v985, 0.0
    %vm994 = vcmp.gt.f32.partialorder %v986, 0.0
    %v995 = vmul.f32 %v979, 0.2
    %v996 = vmul.f32 %v980, 0.2
    %v997 = vmul.f32 %v981, 0.2
    %v998 = vmul.f32 %v982, 0.2
    %v999 = vmul.f32 %v983, 0.2
    %v1000 = vmul.f32 %v984, 0.2
    %v1001 = vmul.f32 %v985, 0.2
    %v1002 = vmul.f32 %v986, 0.2
    %v1003 = vsel %vm987, %v979, %v995
    %v1004 = vsel %vm988, %v980, %v996
    %v1005 = vsel %vm989, %v981, %v997
    %v1006 = vsel %vm990, %v982, %v998
    %v1007 = vsel %vm991, %v983, %v999
    %v1008 = vsel %vm992, %v984, %v1000
    %v1009 = vsel %vm993, %v985, %v1001
    %v1010 = vsel %vm994, %v986, %v1002
    %v1011 = vsub.f32 %v139, %v1003
    %v1012 = vsub.f32 %v140, %v1004
    %v1013 = vsub.f32 %v141, %v1005
    %v1014 = vsub.f32 %v142, %v1006
    %v1015 = vsub.f32 %v143, %v1007
    %v1016 = vsub.f32 %v144, %v1008
    %v1017 = vsub.f32 %v145, %v1009
    %v1018 = vsub.f32 %v146, %v1010
    %v1019 = vsel %vm98, %v1011, -inf
    %1020 = vmax.xlane.f32.xlu0 %v1019
    %v1021 = vpop.xlane.xlu0 %1020
    %v1022 = vsel %vm98, %v1012, -inf
    %1023 = vmax.xlane.f32.xlu0 %v1022
    %v1024 = vpop.xlane.xlu0 %1023
    %v1025 = vsel %vm98, %v1013, -inf
    %1026 = vmax.xlane.f32.xlu0 %v1025
    %v1027 = vpop.xlane.xlu0 %1026
    %v1028 = vsel %vm98, %v1014, -inf
    %1029 = vmax.xlane.f32.xlu0 %v1028
    %v1030 = vpop.xlane.xlu0 %1029
    %v1031 = vsel %vm98, %v1015, -inf
    %1032 = vmax.xlane.f32.xlu0 %v1031
    %v1033 = vpop.xlane.xlu0 %1032
    %v1034 = vsel %vm98, %v1016, -inf
    %1035 = vmax.xlane.f32.xlu0 %v1034
    %v1036 = vpop.xlane.xlu0 %1035
    %v1037 = vsel %vm98, %v1017, -inf
    %1038 = vmax.xlane.f32.xlu0 %v1037
    %v1039 = vpop.xlane.xlu0 %1038
    %v1040 = vsel %vm98, %v1018, -inf
    %1041 = vmax.xlane.f32.xlu0 %v1040
    %v1042 = vpop.xlane.xlu0 %1041
    %v1043 = vsub.f32 %v1011, %v1021
    %v1044 = vsub.f32 %v1012, %v1024
    %v1045 = vsub.f32 %v1013, %v1027
    %v1046 = vsub.f32 %v1014, %v1030
    %v1047 = vsub.f32 %v1015, %v1033
    %v1048 = vsub.f32 %v1016, %v1036
    %v1049 = vsub.f32 %v1017, %v1039
    %v1050 = vsub.f32 %v1018, %v1042
    %v1051 = vmul.f32 %v1043, 1.442695
    %v1052 = vpow.pop %v1051
    %v1053 = vmul.f32 %v1044, 1.442695
    %v1054 = vpow.pop %v1053
    %v1055 = vmul.f32 %v1045, 1.442695
    %v1056 = vpow.pop %v1055
    %v1057 = vmul.f32 %v1046, 1.442695
    %v1058 = vpow.pop %v1057
    %v1059 = vmul.f32 %v1047, 1.442695
    %v1060 = vpow.pop %v1059
    %v1061 = vmul.f32 %v1048, 1.442695
    %v1062 = vpow.pop %v1061
    %v1063 = vmul.f32 %v1049, 1.442695
    %v1064 = vpow.pop %v1063
    %v1065 = vmul.f32 %v1050, 1.442695
    %v1066 = vpow.pop %v1065
    %v1067 = vsel %vm98, %v1052, 0.0
    %1068 = vadd.xlane.f32.xlu0 %v1067
    %v1069 = vpop.xlane.xlu0 %1068
    %v1070 = vsel %vm98, %v1054, 0.0
    %1071 = vadd.xlane.f32.xlu0 %v1070
    %v1072 = vpop.xlane.xlu0 %1071
    %v1073 = vsel %vm98, %v1056, 0.0
    %1074 = vadd.xlane.f32.xlu0 %v1073
    %v1075 = vpop.xlane.xlu0 %1074
    %v1076 = vsel %vm98, %v1058, 0.0
    %1077 = vadd.xlane.f32.xlu0 %v1076
    %v1078 = vpop.xlane.xlu0 %1077
    %v1079 = vsel %vm98, %v1060, 0.0
    %1080 = vadd.xlane.f32.xlu0 %v1079
    %v1081 = vpop.xlane.xlu0 %1080
    %v1082 = vsel %vm98, %v1062, 0.0
    %1083 = vadd.xlane.f32.xlu0 %v1082
    %v1084 = vpop.xlane.xlu0 %1083
    %v1085 = vsel %vm98, %v1064, 0.0
    %1086 = vadd.xlane.f32.xlu0 %v1085
    %v1087 = vpop.xlane.xlu0 %1086
    %v1088 = vsel %vm98, %v1066, 0.0
    %1089 = vadd.xlane.f32.xlu0 %v1088
    %v1090 = vpop.xlane.xlu0 %1089
    %v1091 = vrcp.pop %v1069
    %v1092 = vrcp.pop %v1072
    %v1093 = vrcp.pop %v1075
    %v1094 = vrcp.pop %v1078
    %v1095 = vrcp.pop %v1081
    %v1096 = vrcp.pop %v1084
    %v1097 = vrcp.pop %v1087
    %v1098 = vrcp.pop %v1090
    %v1099 = vpack.c.bf16 %v1054, %v1052
    %v1100 = vpack.c.bf16 %v1058, %v1056
    %v1101 = vpack.c.bf16 %v1062, %v1060
    %v1102 = vpack.c.bf16 %v1066, %v1064
    %1103 = vrot.lane.b32.xlu0 %v196, 80
    %v1104 = vpop.permute.xlu0 %1103
    %1105 = vrot.lane.b32.xlu0 %v197, 80
    %v1106 = vpop.permute.xlu0 %1105
    %1107 = vrot.lane.b32.xlu0 %v198, 80
    %v1108 = vpop.permute.xlu0 %1107
    %1109 = vrot.lane.b32.xlu0 %v199, 80
    %v1110 = vpop.permute.xlu0 %1109
    %v1116 = vsel %vm98, %v1099, 0
    %v1119 = vsel %vm98, %v1100, 0
    %v1122 = vsel %vm98, %v1101, 0
    %v1125 = vsel %vm98, %v1102, 0
    %1127 = vmatpush.bf16.msra.mxu0 0
    %1128 = vmatpush.bf16.msra.mxu0 0
    %1129 = vmatpush.bf16.msra.mxu0 0
    %1130 = vmatpush.bf16.msra.mxu0 0
    %1131 = vmatpush.bf16.msra.mxu0 %v1110
    %1132 = vmatpush.bf16.msra.mxu0 %v1108
    %1133 = vmatpush.bf16.msra.mxu0 %v1106
    %1134 = vmatpush.bf16.msra.mxu0 %v1104
    %1135 = vmatmul.bf16.gmra.mxu0 %v1116
    %v1136 = vpop.f32.mrf.mxu0
    %v1137 = vadd.f32 0.0, %v1136
    %v1138 = vpop.f32.mrf.mxu0
    %v1139 = vadd.f32 0.0, %v1138
    %1140 = vmatmul.bf16.gmra.mxu0 %v1119
    %v1141 = vpop.f32.mrf.mxu0
    %v1142 = vadd.f32 0.0, %v1141
    %v1143 = vpop.f32.mrf.mxu0
    %v1144 = vadd.f32 0.0, %v1143
    %1145 = vmatmul.bf16.gmra.mxu0 %v1122
    %v1146 = vpop.f32.mrf.mxu0
    %v1147 = vadd.f32 0.0, %v1146
    %v1148 = vpop.f32.mrf.mxu0
    %v1149 = vadd.f32 0.0, %v1148
    %1150 = vmatmul.bf16.gmra.mxu0 %v1125
    %v1151 = vpop.f32.mrf.mxu0
    %v1152 = vadd.f32 0.0, %v1151
    %v1153 = vpop.f32.mrf.mxu0
    %v1154 = vadd.f32 0.0, %v1153
    %1155 = vdwg.mxu0
    %v1156 = vmul.f32 %v1137, %v1091
    %v1157 = vmul.f32 %v1139, %v1092
    %v1158 = vmul.f32 %v1142, %v1093
    %v1159 = vmul.f32 %v1144, %v1094
    %v1160 = vmul.f32 %v1147, %v1095
    %v1161 = vmul.f32 %v1149, %v1096
    %v1162 = vmul.f32 %v1152, %v1097
    %v1163 = vmul.f32 %v1154, %v1098
    %vm1164 = vcmp.gt.f32.partialorder %v1156, 0.0
    %vm1165 = vcmp.gt.f32.partialorder %v1157, 0.0
    %vm1166 = vcmp.gt.f32.partialorder %v1158, 0.0
    %vm1167 = vcmp.gt.f32.partialorder %v1159, 0.0
    %vm1168 = vcmp.gt.f32.partialorder %v1160, 0.0
    %vm1169 = vcmp.gt.f32.partialorder %v1161, 0.0
    %vm1170 = vcmp.gt.f32.partialorder %v1162, 0.0
    %vm1171 = vcmp.gt.f32.partialorder %v1163, 0.0
    %v1172 = vmul.f32 %v1156, 1.442695
    %v1173 = vpow.pop %v1172
    %v1174 = vmul.f32 %v1157, 1.442695
    %v1175 = vpow.pop %v1174
    %v1176 = vmul.f32 %v1158, 1.442695
    %v1177 = vpow.pop %v1176
    %v1178 = vmul.f32 %v1159, 1.442695
    %v1179 = vpow.pop %v1178
    %v1180 = vmul.f32 %v1160, 1.442695
    %v1181 = vpow.pop %v1180
    %v1182 = vmul.f32 %v1161, 1.442695
    %v1183 = vpow.pop %v1182
    %v1184 = vmul.f32 %v1162, 1.442695
    %v1185 = vpow.pop %v1184
    %v1186 = vmul.f32 %v1163, 1.442695
    %v1187 = vpow.pop %v1186
    %v1188 = vsub.f32 %v1173, 1.0
    %v1189 = vsub.f32 %v1175, 1.0
    %v1190 = vsub.f32 %v1177, 1.0
    %v1191 = vsub.f32 %v1179, 1.0
    %v1192 = vsub.f32 %v1181, 1.0
    %v1193 = vsub.f32 %v1183, 1.0
    %v1194 = vsub.f32 %v1185, 1.0
    %v1195 = vsub.f32 %v1187, 1.0
    %v1196 = vsel %vm1164, %v1156, %v1188
    %v1197 = vsel %vm1165, %v1157, %v1189
    %v1198 = vsel %vm1166, %v1158, %v1190
    %v1199 = vsel %vm1167, %v1159, %v1191
    %v1200 = vsel %vm1168, %v1160, %v1192
    %v1201 = vsel %vm1169, %v1161, %v1193
    %v1202 = vsel %vm1170, %v1162, %v1194
    %v1203 = vsel %vm1171, %v1163, %v1195
    %1212 = vrot.lane.b32.xlu0 %v938, 8
    %v1213 = vpop.permute.xlu0 %1212
    %1214 = vrot.lane.b32.xlu0 %v939, 8
    %v1215 = vpop.permute.xlu0 %1214
    %1216 = vrot.lane.b32.xlu0 %v940, 8
    %v1217 = vpop.permute.xlu0 %1216
    %1218 = vrot.lane.b32.xlu0 %v941, 8
    %v1219 = vpop.permute.xlu0 %1218
    %1220 = vrot.lane.b32.xlu0 %v942, 8
    %v1221 = vpop.permute.xlu0 %1220
    %1222 = vrot.lane.b32.xlu0 %v943, 8
    %v1223 = vpop.permute.xlu0 %1222
    %1224 = vrot.lane.b32.xlu0 %v944, 8
    %v1225 = vpop.permute.xlu0 %1224
    %1226 = vrot.lane.b32.xlu0 %v945, 8
    %v1227 = vpop.permute.xlu0 %1226
    %1244 = vrot.lane.b32.xlu0 %v1196, 16
    %v1245 = vpop.permute.xlu0 %1244
    %1246 = vrot.lane.b32.xlu0 %v1197, 16
    %v1247 = vpop.permute.xlu0 %1246
    %1248 = vrot.lane.b32.xlu0 %v1198, 16
    %v1249 = vpop.permute.xlu0 %1248
    %1250 = vrot.lane.b32.xlu0 %v1199, 16
    %v1251 = vpop.permute.xlu0 %1250
    %1252 = vrot.lane.b32.xlu0 %v1200, 16
    %v1253 = vpop.permute.xlu0 %1252
    %1254 = vrot.lane.b32.xlu0 %v1201, 16
    %v1255 = vpop.permute.xlu0 %1254
    %1256 = vrot.lane.b32.xlu0 %v1202, 16
    %v1257 = vpop.permute.xlu0 %1256
    %1258 = vrot.lane.b32.xlu0 %v1203, 16
    %v1259 = vpop.permute.xlu0 %1258
    %vm1268 = vcmask 64512
    %v1269 = vsel %vm1268, %v680, %v1213
    %v1270 = vsel %vm1268, %v681, %v1215
    %v1271 = vsel %vm1268, %v682, %v1217
    %v1272 = vsel %vm1268, %v683, %v1219
    %v1273 = vsel %vm1268, %v684, %v1221
    %v1274 = vsel %vm1268, %v685, %v1223
    %v1275 = vsel %vm1268, %v686, %v1225
    %v1276 = vsel %vm1268, %v687, %v1227
    %vm1277 = vcmask 130048
    %v1278 = vsel %vm1277, %v1269, %v1245
    %v1279 = vsel %vm1277, %v1270, %v1247
    %v1280 = vsel %vm1277, %v1271, %v1249
    %v1281 = vsel %vm1277, %v1272, %v1251
    %v1282 = vsel %vm1277, %v1273, %v1253
    %v1283 = vsel %vm1277, %v1274, %v1255
    %v1284 = vsel %vm1277, %v1275, %v1257
    %v1285 = vsel %vm1277, %v1276, %v1259
    %v1286 = vpack.c.bf16 %v1279, %v1278
    %v1287 = vpack.c.bf16 %v1281, %v1280
    %v1288 = vpack.c.bf16 %v1283, %v1282
    %v1289 = vpack.c.bf16 %v1285, %v1284
    %v1290 = vld [vmem:[#allocation2 + $0x40] sm:$0xff]
    %v1291 = vld [vmem:[#allocation2 + $0x48] sm:$0xff]
    %v1292 = vld [vmem:[#allocation2 + $0x50] sm:$0xff]
    %v1293 = vpack.c.bf16 %v1291, %v1290
    %v1294 = vpack.c.bf16 %v1292, %v1292
    %vm1295 = vcmask 195584
    %v1297 = vsel %vm1295, %v1286, 0
    %v1300 = vsel %vm1295, %v1287, 0
    %v1303 = vsel %vm1295, %v1288, 0
    %v1306 = vsel %vm1295, %v1289, 0
    %vm1308 = vcmask 1043456
    %v1310 = vsel %vm1308, %v1294, 0
    %1312 = vmatpush.bf16.msra.mxu0 0
    %1313 = vmatpush.bf16.msra.mxu0 0
    %1314 = vmatpush.bf16.msra.mxu0 0
    %1315 = vmatpush.bf16.msra.mxu0 0
    %1316 = vmatpush.bf16.msra.mxu0 0
    %1317 = vmatpush.bf16.msra.mxu0 0
    %1318 = vmatpush.bf16.msra.mxu0 %v1310
    %1319 = vmatpush.bf16.msra.mxu0 %v1293
    %1320 = vmatmul.bf16.gmra.mxu0 %v1297
    %v1321 = vpop.f32.mrf.mxu0
    %v1322 = vadd.f32 0.0, %v1321
    %v1323 = vpop.f32.mrf.mxu0
    %v1324 = vadd.f32 0.0, %v1323
    %1325 = vmatmul.bf16.gmra.mxu0 %v1300
    %v1326 = vpop.f32.mrf.mxu0
    %v1327 = vadd.f32 0.0, %v1326
    %v1328 = vpop.f32.mrf.mxu0
    %v1329 = vadd.f32 0.0, %v1328
    %1330 = vmatmul.bf16.gmra.mxu0 %v1303
    %v1331 = vpop.f32.mrf.mxu0
    %v1332 = vadd.f32 0.0, %v1331
    %v1333 = vpop.f32.mrf.mxu0
    %v1334 = vadd.f32 0.0, %v1333
    %1335 = vmatmul.bf16.gmra.mxu0 %v1306
    %v1336 = vpop.f32.mrf.mxu0
    %v1337 = vadd.f32 0.0, %v1336
    %v1338 = vpop.f32.mrf.mxu0
    %v1339 = vadd.f32 0.0, %v1338
    %1340 = vdwg.mxu0
    %1349 = vrot.lane.b32.xlu0 %v1322, 95
    %v1350 = vpop.permute.xlu0 %1349
    %1351 = vrot.lane.b32.xlu0 %v1324, 95
    %v1352 = vpop.permute.xlu0 %1351
    %1353 = vrot.lane.b32.xlu0 %v1327, 95
    %v1354 = vpop.permute.xlu0 %1353
    %1355 = vrot.lane.b32.xlu0 %v1329, 95
    %v1356 = vpop.permute.xlu0 %1355
    %1357 = vrot.lane.b32.xlu0 %v1332, 95
    %v1358 = vpop.permute.xlu0 %1357
    %1359 = vrot.lane.b32.xlu0 %v1334, 95
    %v1360 = vpop.permute.xlu0 %1359
    %1361 = vrot.lane.b32.xlu0 %v1337, 95
    %v1362 = vpop.permute.xlu0 %1361
    %1363 = vrot.lane.b32.xlu0 %v1339, 95
    %v1364 = vpop.permute.xlu0 %1363
    %1373 = vxpose.xlu0.b32.start [1/16] %v1350, 128
    %1374 = vxpose.xlu0.b32.cont [2/16] %v1352, 128
    %1375 = vxpose.xlu0.b32.cont [3/16] %v1354, 128
    %1376 = vxpose.xlu0.b32.cont [4/16] %v1356, 128
    %1377 = vxpose.xlu0.b32.cont [5/16] %v1358, 128
    %1378 = vxpose.xlu0.b32.cont [6/16] %v1360, 128
    %1379 = vxpose.xlu0.b32.cont [7/16] %v1362, 128
    %1380 = vxpose.xlu0.b32.cont [8/16] %v1364, 128
    %1381 = vxpose.xlu0.b32.cont [9/16] 0.0, 128
    %1382 = vxpose.xlu0.b32.cont [10/16] 0.0, 128
    %1383 = vxpose.xlu0.b32.cont [11/16] 0.0, 128
    %1384 = vxpose.xlu0.b32.cont [12/16] 0.0, 128
    %1385 = vxpose.xlu0.b32.cont [13/16] 0.0, 128
    %1386 = vxpose.xlu0.b32.cont [14/16] 0.0, 128
    %1387 = vxpose.xlu0.b32.cont [15/16] 0.0, 128
    %1388 = vxpose.xlu0.b32.end [16/16] 0.0, 128
    %v1389 = vpop.trf.xlu0
    %v1390 = vpop.trf.xlu0
    %v1391 = vpop.trf.xlu0
    %v1392 = vpop.trf.xlu0
    %v1393 = vpop.trf.xlu0
    %v1394 = vpop.trf.xlu0
    %v1395 = vpop.trf.xlu0
    %v1396 = vpop.trf.xlu0
    %v1397 = vpop.trf.xlu0
    %v1398 = vpop.trf.xlu0
    %v1399 = vpop.trf.xlu0
    %v1400 = vpop.trf.xlu0
    %v1401 = vpop.trf.xlu0
    %v1402 = vpop.trf.xlu0
    %v1403 = vpop.trf.xlu0
    %v1404 = vpop.trf.xlu0
    %1405 = vset.pattern.permute.xlu0 32
    %1406 = vperm.xlu0 %1405, %v1322
    %v1407 = vpop.permute.xlu0 %1406
    %1409 = vset.pattern.permute.xlu0 32
    %1410 = vperm.xlu0 %1409, %v1324
    %v1411 = vpop.permute.xlu0 %1410
    %1413 = vset.pattern.permute.xlu0 32
    %1414 = vperm.xlu0 %1413, %v1327
    %v1415 = vpop.permute.xlu0 %1414
    %1417 = vset.pattern.permute.xlu0 32
    %1418 = vperm.xlu0 %1417, %v1329
    %v1419 = vpop.permute.xlu0 %1418
    %1421 = vset.pattern.permute.xlu0 32
    %1422 = vperm.xlu0 %1421, %v1332
    %v1423 = vpop.permute.xlu0 %1422
    %1425 = vset.pattern.permute.xlu0 32
    %1426 = vperm.xlu0 %1425, %v1334
    %v1427 = vpop.permute.xlu0 %1426
    %1429 = vset.pattern.permute.xlu0 32
    %1430 = vperm.xlu0 %1429, %v1337
    %v1431 = vpop.permute.xlu0 %1430
    %1433 = vset.pattern.permute.xlu0 32
    %1434 = vperm.xlu0 %1433, %v1339
    %v1435 = vpop.permute.xlu0 %1434
    %v1437 = vperm.slane %v1389, 0
    %v1438 = vadd.f32 %v1407, %v1437
    %v1439 = vadd.f32 %v1411, %v1437
    %v1440 = vadd.f32 %v1415, %v1437
    %v1441 = vadd.f32 %v1419, %v1437
    %v1442 = vadd.f32 %v1423, %v1437
    %v1443 = vadd.f32 %v1427, %v1437
    %v1444 = vadd.f32 %v1431, %v1437
    %v1445 = vadd.f32 %v1435, %v1437
    %vm1446 = vcmp.gt.f32.partialorder %v1438, 0.0
    %vm1447 = vcmp.gt.f32.partialorder %v1439, 0.0
    %vm1448 = vcmp.gt.f32.partialorder %v1440, 0.0
    %vm1449 = vcmp.gt.f32.partialorder %v1441, 0.0
    %vm1450 = vcmp.gt.f32.partialorder %v1442, 0.0
    %vm1451 = vcmp.gt.f32.partialorder %v1443, 0.0
    %vm1452 = vcmp.gt.f32.partialorder %v1444, 0.0
    %vm1453 = vcmp.gt.f32.partialorder %v1445, 0.0
    %v1454 = vmul.f32 %v1438, 0.2
    %v1455 = vmul.f32 %v1439, 0.2
    %v1456 = vmul.f32 %v1440, 0.2
    %v1457 = vmul.f32 %v1441, 0.2
    %v1458 = vmul.f32 %v1442, 0.2
    %v1459 = vmul.f32 %v1443, 0.2
    %v1460 = vmul.f32 %v1444, 0.2
    %v1461 = vmul.f32 %v1445, 0.2
    %v1462 = vsel %vm1446, %v1438, %v1454
    %v1463 = vsel %vm1447, %v1439, %v1455
    %v1464 = vsel %vm1448, %v1440, %v1456
    %v1465 = vsel %vm1449, %v1441, %v1457
    %v1466 = vsel %vm1450, %v1442, %v1458
    %v1467 = vsel %vm1451, %v1443, %v1459
    %v1468 = vsel %vm1452, %v1444, %v1460
    %v1469 = vsel %vm1453, %v1445, %v1461
    %v1470 = vsub.f32 %v139, %v1462
    %v1471 = vsub.f32 %v140, %v1463
    %v1472 = vsub.f32 %v141, %v1464
    %v1473 = vsub.f32 %v142, %v1465
    %v1474 = vsub.f32 %v143, %v1466
    %v1475 = vsub.f32 %v144, %v1467
    %v1476 = vsub.f32 %v145, %v1468
    %v1477 = vsub.f32 %v146, %v1469
    %v1478 = vsel %vm98, %v1470, -inf
    %1479 = vmax.xlane.f32.xlu0 %v1478
    %v1480 = vpop.xlane.xlu0 %1479
    %v1481 = vsel %vm98, %v1471, -inf
    %1482 = vmax.xlane.f32.xlu0 %v1481
    %v1483 = vpop.xlane.xlu0 %1482
    %v1484 = vsel %vm98, %v1472, -inf
    %1485 = vmax.xlane.f32.xlu0 %v1484
    %v1486 = vpop.xlane.xlu0 %1485
    %v1487 = vsel %vm98, %v1473, -inf
    %1488 = vmax.xlane.f32.xlu0 %v1487
    %v1489 = vpop.xlane.xlu0 %1488
    %v1490 = vsel %vm98, %v1474, -inf
    %1491 = vmax.xlane.f32.xlu0 %v1490
    %v1492 = vpop.xlane.xlu0 %1491
    %v1493 = vsel %vm98, %v1475, -inf
    %1494 = vmax.xlane.f32.xlu0 %v1493
    %v1495 = vpop.xlane.xlu0 %1494
    %v1496 = vsel %vm98, %v1476, -inf
    %1497 = vmax.xlane.f32.xlu0 %v1496
    %v1498 = vpop.xlane.xlu0 %1497
    %v1499 = vsel %vm98, %v1477, -inf
    %1500 = vmax.xlane.f32.xlu0 %v1499
    %v1501 = vpop.xlane.xlu0 %1500
    %v1502 = vsub.f32 %v1470, %v1480
    %v1503 = vsub.f32 %v1471, %v1483
    %v1504 = vsub.f32 %v1472, %v1486
    %v1505 = vsub.f32 %v1473, %v1489
    %v1506 = vsub.f32 %v1474, %v1492
    %v1507 = vsub.f32 %v1475, %v1495
    %v1508 = vsub.f32 %v1476, %v1498
    %v1509 = vsub.f32 %v1477, %v1501
    %v1510 = vmul.f32 %v1502, 1.442695
    %v1511 = vpow.pop %v1510
    %v1512 = vmul.f32 %v1503, 1.442695
    %v1513 = vpow.pop %v1512
    %v1514 = vmul.f32 %v1504, 1.442695
    %v1515 = vpow.pop %v1514
    %v1516 = vmul.f32 %v1505, 1.442695
    %v1517 = vpow.pop %v1516
    %v1518 = vmul.f32 %v1506, 1.442695
    %v1519 = vpow.pop %v1518
    %v1520 = vmul.f32 %v1507, 1.442695
    %v1521 = vpow.pop %v1520
    %v1522 = vmul.f32 %v1508, 1.442695
    %v1523 = vpow.pop %v1522
    %v1524 = vmul.f32 %v1509, 1.442695
    %v1525 = vpow.pop %v1524
    %v1526 = vsel %vm98, %v1511, 0.0
    %1527 = vadd.xlane.f32.xlu0 %v1526
    %v1528 = vpop.xlane.xlu0 %1527
    %v1529 = vsel %vm98, %v1513, 0.0
    %1530 = vadd.xlane.f32.xlu0 %v1529
    %v1531 = vpop.xlane.xlu0 %1530
    %v1532 = vsel %vm98, %v1515, 0.0
    %1533 = vadd.xlane.f32.xlu0 %v1532
    %v1534 = vpop.xlane.xlu0 %1533
    %v1535 = vsel %vm98, %v1517, 0.0
    %1536 = vadd.xlane.f32.xlu0 %v1535
    %v1537 = vpop.xlane.xlu0 %1536
    %v1538 = vsel %vm98, %v1519, 0.0
    %1539 = vadd.xlane.f32.xlu0 %v1538
    %v1540 = vpop.xlane.xlu0 %1539
    %v1541 = vsel %vm98, %v1521, 0.0
    %1542 = vadd.xlane.f32.xlu0 %v1541
    %v1543 = vpop.xlane.xlu0 %1542
    %v1544 = vsel %vm98, %v1523, 0.0
    %1545 = vadd.xlane.f32.xlu0 %v1544
    %v1546 = vpop.xlane.xlu0 %1545
    %v1547 = vsel %vm98, %v1525, 0.0
    %1548 = vadd.xlane.f32.xlu0 %v1547
    %v1549 = vpop.xlane.xlu0 %1548
    %v1550 = vrcp.pop %v1528
    %v1551 = vrcp.pop %v1531
    %v1552 = vrcp.pop %v1534
    %v1553 = vrcp.pop %v1537
    %v1554 = vrcp.pop %v1540
    %v1555 = vrcp.pop %v1543
    %v1556 = vrcp.pop %v1546
    %v1557 = vrcp.pop %v1549
    %v1558 = vpack.c.bf16 %v1513, %v1511
    %v1559 = vpack.c.bf16 %v1517, %v1515
    %v1560 = vpack.c.bf16 %v1521, %v1519
    %v1561 = vpack.c.bf16 %v1525, %v1523
    %v1562 = vpack.c.bf16 %v1324, %v1322
    %v1563 = vpack.c.bf16 %v1329, %v1327
    %v1564 = vpack.c.bf16 %v1334, %v1332
    %v1565 = vpack.c.bf16 %v1339, %v1337
    %v1567 = vsel %vm98, %v1558, 0
    %v1570 = vsel %vm98, %v1559, 0
    %v1573 = vsel %vm98, %v1560, 0
    %v1576 = vsel %vm98, %v1561, 0
    %1578 = vmatpush.bf16.msra.mxu0 0
    %1579 = vmatpush.bf16.msra.mxu0 0
    %1580 = vmatpush.bf16.msra.mxu0 0
    %1581 = vmatpush.bf16.msra.mxu0 0
    %1582 = vmatpush.bf16.msra.mxu0 %v1565
    %1583 = vmatpush.bf16.msra.mxu0 %v1564
    %1584 = vmatpush.bf16.msra.mxu0 %v1563
    %1585 = vmatpush.bf16.msra.mxu0 %v1562
    %1586 = vmatmul.bf16.gmra.mxu0 %v1567
    %v1587 = vpop.f32.mrf.mxu0
    %v1588 = vadd.f32 0.0, %v1587
    %v1589 = vpop.f32.mrf.mxu0
    %v1590 = vadd.f32 0.0, %v1589
    %1591 = vmatmul.bf16.gmra.mxu0 %v1570
    %v1592 = vpop.f32.mrf.mxu0
    %v1593 = vadd.f32 0.0, %v1592
    %v1594 = vpop.f32.mrf.mxu0
    %v1595 = vadd.f32 0.0, %v1594
    %1596 = vmatmul.bf16.gmra.mxu0 %v1573
    %v1597 = vpop.f32.mrf.mxu0
    %v1598 = vadd.f32 0.0, %v1597
    %v1599 = vpop.f32.mrf.mxu0
    %v1600 = vadd.f32 0.0, %v1599
    %1601 = vmatmul.bf16.gmra.mxu0 %v1576
    %v1602 = vpop.f32.mrf.mxu0
    %v1603 = vadd.f32 0.0, %v1602
    %v1604 = vpop.f32.mrf.mxu0
    %v1605 = vadd.f32 0.0, %v1604
    %1606 = vdwg.mxu0
    %v1607 = vmul.f32 %v1588, %v1550
    %v1608 = vmul.f32 %v1590, %v1551
    %v1609 = vmul.f32 %v1593, %v1552
    %v1610 = vmul.f32 %v1595, %v1553
    %v1611 = vmul.f32 %v1598, %v1554
    %v1612 = vmul.f32 %v1600, %v1555
    %v1613 = vmul.f32 %v1603, %v1556
    %v1614 = vmul.f32 %v1605, %v1557
    %1623 = vrot.lane.b32.xlu0 %v1607, 32
    %v1624 = vpop.permute.xlu0 %1623
    %1625 = vrot.lane.b32.xlu0 %v1608, 32
    %v1626 = vpop.permute.xlu0 %1625
    %1627 = vrot.lane.b32.xlu0 %v1609, 32
    %v1628 = vpop.permute.xlu0 %1627
    %1629 = vrot.lane.b32.xlu0 %v1610, 32
    %v1630 = vpop.permute.xlu0 %1629
    %1631 = vrot.lane.b32.xlu0 %v1611, 32
    %v1632 = vpop.permute.xlu0 %1631
    %1633 = vrot.lane.b32.xlu0 %v1612, 32
    %v1634 = vpop.permute.xlu0 %1633
    %1635 = vrot.lane.b32.xlu0 %v1613, 32
    %v1636 = vpop.permute.xlu0 %1635
    %1637 = vrot.lane.b32.xlu0 %v1614, 32
    %v1638 = vpop.permute.xlu0 %1637
    %v1647 = vsel %vm154, %v354, %v1624
    %v1648 = vsel %vm154, %v355, %v1626
    %v1649 = vsel %vm154, %v356, %v1628
    %v1650 = vsel %vm154, %v357, %v1630
    %v1651 = vsel %vm154, %v358, %v1632
    %v1652 = vsel %vm154, %v359, %v1634
    %v1653 = vsel %vm154, %v360, %v1636
    %v1654 = vsel %vm154, %v361, %v1638
    %v1655 = vpack.c.bf16 %v1648, %v1647
    %v1656 = vpack.c.bf16 %v1650, %v1649
    %v1657 = vpack.c.bf16 %v1652, %v1651
    %v1658 = vpack.c.bf16 %v1654, %v1653
    %v1659 = vld [vmem:[#allocation2 + $0x58] sm:$0xff]
    %v1660 = vld [vmem:[#allocation2 + $0x60] sm:$0xff]
    %v1661 = vld [vmem:[#allocation2 + $0x68] sm:$0xff]
    %v1662 = vld [vmem:[#allocation2 + $0x70] sm:$0xff]
    %v1663 = vld [vmem:[#allocation2 + $0x78] sm:$0xff]
    %v1664 = vld [vmem:[#allocation2 + $0x80] sm:$0xff]
    %v1665 = vld [vmem:[#allocation2 + $0x88] sm:$0xff]
    %v1666 = vld [vmem:[#allocation2 + $0x90] sm:$0xff]
    %v1667 = vpack.c.bf16 %v1660, %v1659
    %v1668 = vpack.c.bf16 %v1662, %v1661
    %v1669 = vpack.c.bf16 %v1664, %v1663
    %v1670 = vpack.c.bf16 %v1666, %v1665
    %v1672 = vsel %vm98, %v1655, 0
    %v1675 = vsel %vm98, %v1656, 0
    %v1678 = vsel %vm98, %v1657, 0
    %v1681 = vsel %vm98, %v1658, 0
    %1683 = vmatpush.bf16.msra.mxu0 0
    %1684 = vmatpush.bf16.msra.mxu0 0
    %1685 = vmatpush.bf16.msra.mxu0 0
    %1686 = vmatpush.bf16.msra.mxu0 0
    %1687 = vmatpush.bf16.msra.mxu0 %v1670
    %1688 = vmatpush.bf16.msra.mxu0 %v1669
    %1689 = vmatpush.bf16.msra.mxu0 %v1668
    %1690 = vmatpush.bf16.msra.mxu0 %v1667
    %1691 = vmatmul.bf16.gmra.mxu0 %v1672
    %v1692 = vpop.f32.mrf.mxu0
    %v1693 = vadd.f32 0.0, %v1692
    %v1694 = vpop.f32.mrf.mxu0
    %v1695 = vadd.f32 0.0, %v1694
    %1696 = vmatmul.bf16.gmra.mxu0 %v1675
    %v1697 = vpop.f32.mrf.mxu0
    %v1698 = vadd.f32 0.0, %v1697
    %v1699 = vpop.f32.mrf.mxu0
    %v1700 = vadd.f32 0.0, %v1699
    %1701 = vmatmul.bf16.gmra.mxu0 %v1678
    %v1702 = vpop.f32.mrf.mxu0
    %v1703 = vadd.f32 0.0, %v1702
    %v1704 = vpop.f32.mrf.mxu0
    %v1705 = vadd.f32 0.0, %v1704
    %1706 = vmatmul.bf16.gmra.mxu0 %v1681
    %v1707 = vpop.f32.mrf.mxu0
    %v1708 = vadd.f32 0.0, %v1707
    %v1709 = vpop.f32.mrf.mxu0
    %v1710 = vadd.f32 0.0, %v1709
    %1711 = vdwg.mxu0
    %v1712 = vtanh.pop %v1693
    %v1713 = vtanh.pop %v1695
    %v1714 = vtanh.pop %v1698
    %v1715 = vtanh.pop %v1700
    %v1716 = vtanh.pop %v1703
    %v1717 = vtanh.pop %v1705
    %v1718 = vtanh.pop %v1708
    %v1719 = vtanh.pop %v1710
    %1720 = vst.msk [vmem:[%s3] sm:$0xff] %vm154, %v31
    %1721 = vst.msk [vmem:[%s3 + $0x8] sm:$0xff] %vm154, %v32
    %1722 = vst.msk [vmem:[%s3 + $0x10] sm:$0xff] %vm154, %v33
    %1723 = vst.msk [vmem:[%s3 + $0x18] sm:$0xff] %vm154, %v34
    %1724 = vst.msk [vmem:[%s3 + $0x20] sm:$0xff] %vm154, %v35
    %1725 = vst.msk [vmem:[%s3 + $0x28] sm:$0xff] %vm154, %v36
    %1726 = vst.msk [vmem:[%s3 + $0x30] sm:$0xff] %vm154, %v37
    %1727 = vst.msk [vmem:[%s3 + $0x38] sm:$0xff] %vm154, %v38
    %1736 = vrot.lane.b32.xlu0 %v1712, 32
    %v1737 = vpop.permute.xlu0 %1736
    %1738 = vrot.lane.b32.xlu0 %v1713, 32
    %v1739 = vpop.permute.xlu0 %1738
    %1740 = vrot.lane.b32.xlu0 %v1714, 32
    %v1741 = vpop.permute.xlu0 %1740
    %1742 = vrot.lane.b32.xlu0 %v1715, 32
    %v1743 = vpop.permute.xlu0 %1742
    %1744 = vrot.lane.b32.xlu0 %v1716, 32
    %v1745 = vpop.permute.xlu0 %1744
    %1746 = vrot.lane.b32.xlu0 %v1717, 32
    %v1747 = vpop.permute.xlu0 %1746
    %1748 = vrot.lane.b32.xlu0 %v1718, 32
    %v1749 = vpop.permute.xlu0 %1748
    %1750 = vrot.lane.b32.xlu0 %v1719, 32
    %v1751 = vpop.permute.xlu0 %1750
    %vm1760 = vcmask 392448
    %1761 = vst.msk [vmem:[%s3] sm:$0xff] %vm1760, %v1737
    %1762 = vst.msk [vmem:[%s3 + $0x8] sm:$0xff] %vm1760, %v1739
    %1763 = vst.msk [vmem:[%s3 + $0x10] sm:$0xff] %vm1760, %v1741
    %1764 = vst.msk [vmem:[%s3 + $0x18] sm:$0xff] %vm1760, %v1743
    %1765 = vst.msk [vmem:[%s3 + $0x20] sm:$0xff] %vm1760, %v1745
    %1766 = vst.msk [vmem:[%s3 + $0x28] sm:$0xff] %vm1760, %v1747
    %1767 = vst.msk [vmem:[%s3 + $0x30] sm:$0xff] %vm1760, %v1749
    %1768 = vst.msk [vmem:[%s3 + $0x38] sm:$0xff] %vm1760, %v1751
    // Predicated region
    $region18: #{tpu_custom_call.1} parent=1 // pred_check
      _
    $region19: #{tpu_custom_call.1} parent=1 // pred_check_branch
      %1770 = sbr.rel (0) target = $region21
    $region20: #{tpu_custom_call.1} parent=1 // pred_region
      _
    $region21: #{tpu_custom_call.1} parent=1 // pred_fallthru
      _
    // Predicated region
    $region22: #{tpu_custom_call.1} parent=1 // pred_check
      _
    $region23: #{tpu_custom_call.1} parent=1 // pred_check_branch
      %1772 = sbr.rel (0) target = $region25
    $region24: #{tpu_custom_call.1} parent=1 // pred_region
      _
    $region25: #{tpu_custom_call.1} parent=1 // pred_fallthru
      _
    %1773 = vsyncpa [#allocation3], 1

</llo_original>
